<compile_context>
chip_gen: v5e
topology: v5e:2x2
jax: 0.10.0
libtpu: 0.0.40
codegen_flags: <defaults>
</compile_context>

<pallas_src>
import jax
import jax.numpy as jnp
from jax.experimental import pallas as pl
from jax.experimental.pallas import tpu as pltpu

LANES = 128


def _round_up(x, m):
    return (x + m - 1) // m * m


# ---------------------------------------------------------------------------
# Kernels
# ---------------------------------------------------------------------------
def _conv_pool_relu_kernel(p_ref, w_ref, b_ref, o_ref):
    """Fused im2col-matmul + bias + 2x2 max-pool + ReLU for one M-tile.

    p_ref: (4, TM, Kpad) bf16  im2col patches, leading dim = pooling offset
    w_ref: (Kpad, 128)   bf16  zero-padded flattened conv weight
    b_ref: (1, 128)      f32   zero-padded bias
    o_ref: (TM, 128)     f32   pooled + ReLU output (lane-dense)
    """
    tm = o_ref.shape[0]
    kp = p_ref.shape[2]
    # Single long MXU push for all 4 pooling offsets.  TM is a multiple of 16,
    # so merging the leading dims is layout-preserving.
    y = jnp.dot(p_ref[...].reshape(4 * tm, kp), w_ref[...],
                preferred_element_type=jnp.float32)            # (4*TM, 128)
    # 2x2 max-pool = elementwise max of the 4 offset slabs (pure VPU work).
    pooled = jnp.maximum(jnp.maximum(y[0 * tm:1 * tm], y[1 * tm:2 * tm]),
                         jnp.maximum(y[2 * tm:3 * tm], y[3 * tm:4 * tm]))
    # Bias hoisted out of the max (per-channel constant commutes with max).
    o_ref[...] = jnp.maximum(pooled + b_ref[...], 0.0).astype(o_ref.dtype)


def _linear_kernel(x_ref, w_ref, b_ref, o_ref):
    o_ref[...] = (jnp.dot(x_ref[...], w_ref[...],
                          preferred_element_type=jnp.float32)
                  + b_ref[...]).astype(o_ref.dtype)


# ---------------------------------------------------------------------------
# Wrappers
# ---------------------------------------------------------------------------
def conv_pool_relu(x, wm, bm, cout, kh, kw):
    """ReLU(MaxPool2d(2)(Conv2d(x))).  x: NHWC (B, H, W, Cin) float32.
    wm: (Kpad, 128) bf16 prepacked weight; bm: (1, 128) f32 prepacked bias.
    Returns NHWC (B, PH, PW, cout) float32."""
    B, H, W, Cin = x.shape
    OH, OW = H - kh + 1, W - kw + 1
    PH, PW = OH // 2, OW // 2
    K = kh * kw * Cin
    Kpad = wm.shape[0]
    M = B * PH * PW

    # --- im2col glue (plain JAX; feature order (ky, kx, cin)) ---
    # TODO(synk): fold the im2col gather + all three layers into a single
    # pallas_call keeping activations in VMEM scratch to remove the HBM
    # round-trips between layers.
    cols = jnp.concatenate(
        [x[:, ky:ky + OH, kx:kx + OW, :] for ky in range(kh) for kx in range(kw)],
        axis=-1)                                           # (B, OH, OW, K)
    cols = cols.reshape(B, PH, 2, PW, 2, K)
    cols = jnp.transpose(cols, (2, 4, 0, 1, 3, 5)).reshape(4, M, K)
    if Kpad > K:
        cols = jnp.pad(cols, ((0, 0), (0, 0), (0, Kpad - K)))
    cols = cols.astype(jnp.bfloat16)                       # halve DMA bytes

    TM = min(512, _round_up(M, 16))                        # rows per grid step
    grid = (pl.cdiv(M, TM),)

    out = pl.pallas_call(
        _conv_pool_relu_kernel,
        out_shape=jax.ShapeDtypeStruct((M, LANES), jnp.float32),
        grid=grid,
        in_specs=[
            pl.BlockSpec((4, TM, Kpad), lambda i: (0, i, 0)),
            pl.BlockSpec((Kpad, LANES), lambda i: (0, 0)),
            pl.BlockSpec((1, LANES), lambda i: (0, 0)),
        ],
        out_specs=pl.BlockSpec((TM, LANES), lambda i: (i, 0)),
        compiler_params=pltpu.CompilerParams(
            dimension_semantics=("parallel",)),
    )(cols, wm, bm)

    return out.reshape(B, PH, PW, LANES)[..., :cout]


def linear(x, wm, bm, out_dim):
    """x: (B, F) f32; wm: (F, 128) bf16 prepacked; bm: (1, 128) f32."""
    B, F = x.shape
    out = pl.pallas_call(
        _linear_kernel,
        out_shape=jax.ShapeDtypeStruct((B, LANES), jnp.float32),
        grid=(1,),
        in_specs=[
            pl.BlockSpec((B, F), lambda i: (0, 0)),
            pl.BlockSpec((F, LANES), lambda i: (0, 0)),
            pl.BlockSpec((1, LANES), lambda i: (0, 0)),
        ],
        out_specs=pl.BlockSpec((B, LANES), lambda i: (0, 0)),
    )(x.astype(jnp.bfloat16), wm, bm)
    return out[:, :out_dim]


# ---------------------------------------------------------------------------
# Params (PyTorch layout) + one-time repacking for the kernels
# ---------------------------------------------------------------------------
def init_params(key):
    k1, k2, k3, k4, k5, k6 = jax.random.split(key, 6)
    return {
        "conv1_w": 0.1 * jax.random.normal(k1, (10, 1, 5, 5), jnp.float32),
        "conv1_b": 0.1 * jax.random.normal(k2, (10,), jnp.float32),
        "conv2_w": 0.1 * jax.random.normal(k3, (20, 10, 5, 5), jnp.float32),
        "conv2_b": 0.1 * jax.random.normal(k4, (20,), jnp.float32),
        "linear_w": 0.1 * jax.random.normal(k5, (10, 320), jnp.float32),
        "linear_b": 0.1 * jax.random.normal(k6, (10,), jnp.float32),
    }


def _prep_conv(w, b):
    cout, cin, kh, kw = w.shape
    K = kh * kw * cin
    kpad = _round_up(K, 8)
    wm = jnp.transpose(w, (2, 3, 1, 0)).reshape(K, cout)   # (ky,kx,cin) x cout
    wm = jnp.pad(wm, ((0, kpad - K), (0, LANES - cout))).astype(jnp.bfloat16)
    bm = jnp.pad(b.reshape(1, cout),
                 ((0, 0), (0, LANES - cout))).astype(jnp.float32)
    return wm, bm


def _prep_linear(w, b, c, h, w_sp):
    out_dim, F = w.shape
    # PyTorch x.view(B, -1) flattens NCHW; activations here are NHWC, so
    # permute the weight columns ONCE instead of transposing activations.
    wm = (w.reshape(out_dim, c, h, w_sp).transpose(0, 2, 3, 1)
          .reshape(out_dim, F).T)                          # (F, out_dim)
    wm = jnp.pad(wm, ((0, 0), (0, LANES - out_dim))).astype(jnp.bfloat16)
    bm = jnp.pad(b.reshape(1, out_dim),
                 ((0, 0), (0, LANES - out_dim))).astype(jnp.float32)
    return wm, bm


def prepare_params(params):
    c1w, c1b = _prep_conv(params["conv1_w"], params["conv1_b"])
    c2w, c2b = _prep_conv(params["conv2_w"], params["conv2_b"])
    lw, lb = _prep_linear(params["linear_w"], params["linear_b"], 20, 4, 4)
    return {"conv1_w": c1w, "conv1_b": c1b,
            "conv2_w": c2w, "conv2_b": c2b,
            "linear_w": lw, "linear_b": lb}


@jax.jit
def forward(prepped, x):
    x = jnp.transpose(x, (0, 2, 3, 1))                     # NCHW -> NHWC (once)
    x = conv_pool_relu(x, prepped["conv1_w"], prepped["conv1_b"], 10, 5, 5)
    x = conv_pool_relu(x, prepped["conv2_w"], prepped["conv2_b"], 20, 5, 5)
    x = x.reshape(x.shape[0], -1)                          # (B, 320), HWC order
    return linear(x, prepped["linear_w"], prepped["linear_b"], 10)


if __name__ == "__main__":
    key = jax.random.PRNGKey(0)
    pkey, xkey = jax.random.split(key)
    params = init_params(pkey)
    prepped = prepare_params(params)
    # 28x28 input is forced by the module (Linear(320) == 20*4*4 after 2x conv+pool).
    x = jax.random.normal(xkey, (2, 1, 28, 28), jnp.float32)
    out = forward(prepped, x)
    jax.block_until_ready(out)
    assert out.shape == (2, 10)
    print("KERNEL_OK")
</pallas_src>

<mosaic_0001>
module attributes {stable_mosaic.version = 11 : i64} {
  func.func @_conv_pool_relu_kernel(%arg0: i32, %arg1: memref<4x288x32xbf16, #tpu.memory_space<vmem>>, %arg2: memref<32x128xbf16, #tpu.memory_space<vmem>>, %arg3: memref<1x128xf32, #tpu.memory_space<vmem>>, %arg4: memref<288x128xf32, #tpu.memory_space<vmem>>) attributes {dimension_semantics = [#tpu.dimension_semantics<parallel>], iteration_bounds = array<i64: 1>, scalar_prefetch = 0 : i64, scratch_operands = 0 : i64, tpu.core_type = #tpu.core_type<tc>, window_params = [{transform_indices = @transform_0, window_bounds = array<i64: 4, 288, 32>}, {pipeline_mode = #tpu.pipeline_mode<synchronous>, transform_indices = @transform_1, window_bounds = array<i64: 32, 128>}, {pipeline_mode = #tpu.pipeline_mode<synchronous>, transform_indices = @transform_2, window_bounds = array<i64: 1, 128>}, {transform_indices = @transform_3, window_bounds = array<i64: 288, 128>}]} {
    %c0 = arith.constant 0 : index
    %c0_0 = arith.constant 0 : index
    %c0_1 = arith.constant 0 : index
    %0 = vector.load %arg1[%c0, %c0_0, %c0_1] : memref<4x288x32xbf16, #tpu.memory_space<vmem>>, vector<4x288x32xbf16>
    %1 = vector.shape_cast %0 : vector<4x288x32xbf16> to vector<1152x32xbf16>
    %c0_2 = arith.constant 0 : index
    %c0_3 = arith.constant 0 : index
    %2 = vector.load %arg2[%c0_2, %c0_3] : memref<32x128xbf16, #tpu.memory_space<vmem>>, vector<32x128xbf16>
    %cst = arith.constant dense<0.000000e+00> : vector<1152x128xf32>
    %3 = tpu.matmul %1, %2, %cst {dimension_numbers = #tpu.dot_dimension_numbers<[1], [0], [0], [1], [0, 0, 1, 1], [], []>} : vector<1152x32xbf16>, vector<32x128xbf16>, vector<1152x128xf32> -> vector<1152x128xf32>
    %4 = vector.extract_strided_slice %3 {offsets = [0, 0], sizes = [288, 128], strides = [1, 1]} : vector<1152x128xf32> to vector<288x128xf32>
    %5 = vector.extract_strided_slice %3 {offsets = [288, 0], sizes = [288, 128], strides = [1, 1]} : vector<1152x128xf32> to vector<288x128xf32>
    %6 = arith.maximumf %4, %5 : vector<288x128xf32>
    %7 = vector.extract_strided_slice %3 {offsets = [576, 0], sizes = [288, 128], strides = [1, 1]} : vector<1152x128xf32> to vector<288x128xf32>
    %8 = vector.extract_strided_slice %3 {offsets = [864, 0], sizes = [288, 128], strides = [1, 1]} : vector<1152x128xf32> to vector<288x128xf32>
    %9 = arith.maximumf %7, %8 : vector<288x128xf32>
    %10 = arith.maximumf %6, %9 : vector<288x128xf32>
    %c0_4 = arith.constant 0 : index
    %c0_5 = arith.constant 0 : index
    %11 = vector.load %arg3[%c0_4, %c0_5] : memref<1x128xf32, #tpu.memory_space<vmem>>, vector<1x128xf32>
    %12 = vector.broadcast %11 : vector<1x128xf32> to vector<288x128xf32>
    %13 = arith.addf %10, %12 : vector<288x128xf32>
    %cst_6 = arith.constant 0.000000e+00 : f32
    %14 = vector.broadcast %cst_6 : f32 to vector<288x128xf32>
    %15 = arith.maximumf %13, %14 : vector<288x128xf32>
    %c0_7 = arith.constant 0 : index
    %c0_8 = arith.constant 0 : index
    %16 = vector.load %arg4[%c0_7, %c0_8] : memref<288x128xf32, #tpu.memory_space<vmem>>, vector<288x128xf32>
    tpu.vector_store %arg4[%c0_7, %c0_8], %15 {strides = array<i32>} : memref<288x128xf32, #tpu.memory_space<vmem>>, vector<288x128xf32>,
    return
  }
  func.func @transform_0(%arg0: i32) -> (i32, i32, i32) {
    %c0_i32 = arith.constant 0 : i32
    %c0_i32_0 = arith.constant 0 : i32
    %c0_i32_1 = arith.constant 0 : i32
    return %c0_i32, %arg0, %c0_i32_0 : i32, i32, i32
  }
  func.func @transform_1(%arg0: i32) -> (i32, i32) {
    %c0_i32 = arith.constant 0 : i32
    %c0_i32_0 = arith.constant 0 : i32
    %c0_i32_1 = arith.constant 0 : i32
    return %c0_i32, %c0_i32_0 : i32, i32
  }
  func.func @transform_2(%arg0: i32) -> (i32, i32) {
    %c0_i32 = arith.constant 0 : i32
    %c0_i32_0 = arith.constant 0 : i32
    %c0_i32_1 = arith.constant 0 : i32
    return %c0_i32, %c0_i32_0 : i32, i32
  }
  func.func @transform_3(%arg0: i32) -> (i32, i32) {
    %c0_i32 = arith.constant 0 : i32
    %c0_i32_0 = arith.constant 0 : i32
    return %arg0, %c0_i32 : i32, i32
  }
}

module attributes {stable_mosaic.version = 11 : i64} {
  func.func @_conv_pool_relu_kernel(%arg0: i32, %arg1: memref<4x32x256xbf16, #tpu.memory_space<vmem>>, %arg2: memref<256x128xbf16, #tpu.memory_space<vmem>>, %arg3: memref<1x128xf32, #tpu.memory_space<vmem>>, %arg4: memref<32x128xf32, #tpu.memory_space<vmem>>) attributes {dimension_semantics = [#tpu.dimension_semantics<parallel>], iteration_bounds = array<i64: 1>, scalar_prefetch = 0 : i64, scratch_operands = 0 : i64, tpu.core_type = #tpu.core_type<tc>, window_params = [{transform_indices = @transform_0, window_bounds = array<i64: 4, 32, 256>}, {pipeline_mode = #tpu.pipeline_mode<synchronous>, transform_indices = @transform_1, window_bounds = array<i64: 256, 128>}, {pipeline_mode = #tpu.pipeline_mode<synchronous>, transform_indices = @transform_2, window_bounds = array<i64: 1, 128>}, {transform_indices = @transform_3, window_bounds = array<i64: 32, 128>}]} {
    %c0 = arith.constant 0 : index
    %c0_0 = arith.constant 0 : index
    %c0_1 = arith.constant 0 : index
    %0 = vector.load %arg1[%c0, %c0_0, %c0_1] : memref<4x32x256xbf16, #tpu.memory_space<vmem>>, vector<4x32x256xbf16>
    %1 = vector.shape_cast %0 : vector<4x32x256xbf16> to vector<128x256xbf16>
    %c0_2 = arith.constant 0 : index
    %c0_3 = arith.constant 0 : index
    %2 = vector.load %arg2[%c0_2, %c0_3] : memref<256x128xbf16, #tpu.memory_space<vmem>>, vector<256x128xbf16>
    %cst = arith.constant dense<0.000000e+00> : vector<128x128xf32>
    %3 = tpu.matmul %1, %2, %cst {dimension_numbers = #tpu.dot_dimension_numbers<[1], [0], [0], [1], [0, 0, 1, 1], [], []>} : vector<128x256xbf16>, vector<256x128xbf16>, vector<128x128xf32> -> vector<128x128xf32>
    %4 = vector.extract_strided_slice %3 {offsets = [0, 0], sizes = [32, 128], strides = [1, 1]} : vector<128x128xf32> to vector<32x128xf32>
    %5 = vector.extract_strided_slice %3 {offsets = [32, 0], sizes = [32, 128], strides = [1, 1]} : vector<128x128xf32> to vector<32x128xf32>
    %6 = arith.maximumf %4, %5 : vector<32x128xf32>
    %7 = vector.extract_strided_slice %3 {offsets = [64, 0], sizes = [32, 128], strides = [1, 1]} : vector<128x128xf32> to vector<32x128xf32>
    %8 = vector.extract_strided_slice %3 {offsets = [96, 0], sizes = [32, 128], strides = [1, 1]} : vector<128x128xf32> to vector<32x128xf32>
    %9 = arith.maximumf %7, %8 : vector<32x128xf32>
    %10 = arith.maximumf %6, %9 : vector<32x128xf32>
    %c0_4 = arith.constant 0 : index
    %c0_5 = arith.constant 0 : index
    %11 = vector.load %arg3[%c0_4, %c0_5] : memref<1x128xf32, #tpu.memory_space<vmem>>, vector<1x128xf32>
    %12 = vector.broadcast %11 : vector<1x128xf32> to vector<32x128xf32>
    %13 = arith.addf %10, %12 : vector<32x128xf32>
    %cst_6 = arith.constant 0.000000e+00 : f32
    %14 = vector.broadcast %cst_6 : f32 to vector<32x128xf32>
    %15 = arith.maximumf %13, %14 : vector<32x128xf32>
    %c0_7 = arith.constant 0 : index
    %c0_8 = arith.constant 0 : index
    %16 = vector.load %arg4[%c0_7, %c0_8] : memref<32x128xf32, #tpu.memory_space<vmem>>, vector<32x128xf32>
    tpu.vector_store %arg4[%c0_7, %c0_8], %15 {strides = array<i32>} : memref<32x128xf32, #tpu.memory_space<vmem>>, vector<32x128xf32>,
    return
  }
  func.func @transform_0(%arg0: i32) -> (i32, i32, i32) {
    %c0_i32 = arith.constant 0 : i32
    %c0_i32_0 = arith.constant 0 : i32
    %c0_i32_1 = arith.constant 0 : i32
    return %c0_i32, %arg0, %c0_i32_0 : i32, i32, i32
  }
  func.func @transform_1(%arg0: i32) -> (i32, i32) {
    %c0_i32 = arith.constant 0 : i32
    %c0_i32_0 = arith.constant 0 : i32
    %c0_i32_1 = arith.constant 0 : i32
    return %c0_i32, %c0_i32_0 : i32, i32
  }
  func.func @transform_2(%arg0: i32) -> (i32, i32) {
    %c0_i32 = arith.constant 0 : i32
    %c0_i32_0 = arith.constant 0 : i32
    %c0_i32_1 = arith.constant 0 : i32
    return %c0_i32, %c0_i32_0 : i32, i32
  }
  func.func @transform_3(%arg0: i32) -> (i32, i32) {
    %c0_i32 = arith.constant 0 : i32
    %c0_i32_0 = arith.constant 0 : i32
    return %arg0, %c0_i32 : i32, i32
  }
}

module attributes {stable_mosaic.version = 11 : i64} {
  func.func @_linear_kernel(%arg0: i32, %arg1: memref<2x320xbf16, #tpu.memory_space<vmem>>, %arg2: memref<320x128xbf16, #tpu.memory_space<vmem>>, %arg3: memref<1x128xf32, #tpu.memory_space<vmem>>, %arg4: memref<2x128xf32, #tpu.memory_space<vmem>>) attributes {dimension_semantics = [#tpu.dimension_semantics<arbitrary>], iteration_bounds = array<i64: 1>, scalar_prefetch = 0 : i64, scratch_operands = 0 : i64, tpu.core_type = #tpu.core_type<tc>, window_params = [{pipeline_mode = #tpu.pipeline_mode<synchronous>, transform_indices = @transform_0, window_bounds = array<i64: 2, 320>}, {pipeline_mode = #tpu.pipeline_mode<synchronous>, transform_indices = @transform_1, window_bounds = array<i64: 320, 128>}, {pipeline_mode = #tpu.pipeline_mode<synchronous>, transform_indices = @transform_2, window_bounds = array<i64: 1, 128>}, {pipeline_mode = #tpu.pipeline_mode<synchronous>, transform_indices = @transform_3, window_bounds = array<i64: 2, 128>}]} {
    %c0 = arith.constant 0 : index
    %c0_0 = arith.constant 0 : index
    %0 = vector.load %arg1[%c0, %c0_0] : memref<2x320xbf16, #tpu.memory_space<vmem>>, vector<2x320xbf16>
    %c0_1 = arith.constant 0 : index
    %c0_2 = arith.constant 0 : index
    %1 = vector.load %arg2[%c0_1, %c0_2] : memref<320x128xbf16, #tpu.memory_space<vmem>>, vector<320x128xbf16>
    %cst = arith.constant dense<0.000000e+00> : vector<2x128xf32>
    %2 = tpu.matmul %0, %1, %cst {dimension_numbers = #tpu.dot_dimension_numbers<[1], [0], [0], [1], [0, 0, 1, 1], [], []>} : vector<2x320xbf16>, vector<320x128xbf16>, vector<2x128xf32> -> vector<2x128xf32>
    %c0_3 = arith.constant 0 : index
    %c0_4 = arith.constant 0 : index
    %3 = vector.load %arg3[%c0_3, %c0_4] : memref<1x128xf32, #tpu.memory_space<vmem>>, vector<1x128xf32>
    %4 = vector.broadcast %3 : vector<1x128xf32> to vector<2x128xf32>
    %5 = arith.addf %2, %4 : vector<2x128xf32>
    %c0_5 = arith.constant 0 : index
    %c0_6 = arith.constant 0 : index
    %6 = vector.load %arg4[%c0_5, %c0_6] : memref<2x128xf32, #tpu.memory_space<vmem>>, vector<2x128xf32>
    tpu.vector_store %arg4[%c0_5, %c0_6], %5 {strides = array<i32>} : memref<2x128xf32, #tpu.memory_space<vmem>>, vector<2x128xf32>,
    return
  }
  func.func @transform_0(%arg0: i32) -> (i32, i32) {
    %c0_i32 = arith.constant 0 : i32
    %c0_i32_0 = arith.constant 0 : i32
    %c0_i32_1 = arith.constant 0 : i32
    return %c0_i32, %c0_i32_0 : i32, i32
  }
  func.func @transform_1(%arg0: i32) -> (i32, i32) {
    %c0_i32 = arith.constant 0 : i32
    %c0_i32_0 = arith.constant 0 : i32
    %c0_i32_1 = arith.constant 0 : i32
    return %c0_i32, %c0_i32_0 : i32, i32
  }
  func.func @transform_2(%arg0: i32) -> (i32, i32) {
    %c0_i32 = arith.constant 0 : i32
    %c0_i32_0 = arith.constant 0 : i32
    %c0_i32_1 = arith.constant 0 : i32
    return %c0_i32, %c0_i32_0 : i32, i32
  }
  func.func @transform_3(%arg0: i32) -> (i32, i32) {
    %c0_i32 = arith.constant 0 : i32
    %c0_i32_0 = arith.constant 0 : i32
    %c0_i32_1 = arith.constant 0 : i32
    return %c0_i32, %c0_i32_0 : i32, i32
  }
}

</mosaic_0001>

<llo_original>
// kernel: forward.3
$region0: #{forward.3}
  #allocation0 [shape = 'u32[]', space=smem, size = 0x4, offset = 0x4, fixed_abs, tag = 'smem constant byte address 0x4 - core index']
  #allocation1 [shape = 'u32[72,128]{1,0:T(1,128)}', space=vmem, size = 0x9000, scoped, tag = 'internal scratch']
  %s0 = inlined_call_operand.vmem [shape: bf16[4,288,32], index: 0, kind: input, shape index: {}]
  %s1 = inlined_call_operand.vmem [shape: bf16[32,128], index: 1, kind: input, shape index: {}]
  %s2 = inlined_call_operand.vmem [shape: f32[1,128], index: 2, kind: input, shape index: {}]
  %s3 = inlined_call_operand.vmem [shape: f32[288,128], index: 3, kind: output, shape index: {}]
  %s4 = sld [smem:[#allocation0]]
  $region22: #{forward.3} parent=0
    _
  %s6 = ssub.s32 1, %s4
  %s7 = scalar_select 0, %s6, %s4
  // Predicated region
  $region2: #{forward.3} parent=0 // pred_check
    _
  $region3: #{forward.3} parent=0 // pred_check_branch
    %9 = sbr.rel (0) target = $region5
  $region4: #{forward.3} parent=0 // pred_region
    _
  $region5: #{forward.3} parent=0 // pred_fallthru
    _
  // Predicated region
  $region6: #{forward.3} parent=0 // pred_check
    _
  $region7: #{forward.3} parent=0 // pred_check_branch
    %11 = sbr.rel (0) target = $region9
  $region8: #{forward.3} parent=0 // pred_region
    _
  $region9: #{forward.3} parent=0 // pred_fallthru
    _
  // Predicated region
  $region10: #{forward.3} parent=0 // pred_check
    _
  $region11: #{forward.3} parent=0 // pred_check_branch
    %13 = sbr.rel (0) target = $region13
  $region12: #{forward.3} parent=0 // pred_region
    _
  $region13: #{forward.3} parent=0 // pred_fallthru
    _
  %v15 = vld [vmem:[%s0] sm:$0xf]
  %v16 = vld [vmem:[%s0 + $0x4] sm:$0xf]
  %v17 = vld [vmem:[%s0 + $0x8] sm:$0xf]
  %v18 = vld [vmem:[%s0 + $0xc] sm:$0xf]
  %v19 = vld [vmem:[%s0 + $0x10] sm:$0xf]
  %v20 = vld [vmem:[%s0 + $0x14] sm:$0xf]
  %v21 = vld [vmem:[%s0 + $0x18] sm:$0xf]
  %v22 = vld [vmem:[%s0 + $0x1c] sm:$0xf]
  %v23 = vld [vmem:[%s0 + $0x20] sm:$0xf]
  %v24 = vld [vmem:[%s0 + $0x24] sm:$0xf]
  %v25 = vld [vmem:[%s0 + $0x28] sm:$0xf]
  %v26 = vld [vmem:[%s0 + $0x2c] sm:$0xf]
  %v27 = vld [vmem:[%s0 + $0x30] sm:$0xf]
  %v28 = vld [vmem:[%s0 + $0x34] sm:$0xf]
  %v29 = vld [vmem:[%s0 + $0x38] sm:$0xf]
  %v30 = vld [vmem:[%s0 + $0x3c] sm:$0xf]
  %v31 = vld [vmem:[%s0 + $0x40] sm:$0xf]
  %v32 = vld [vmem:[%s0 + $0x44] sm:$0xf]
  %v33 = vld [vmem:[%s0 + $0x48] sm:$0xf]
  %v34 = vld [vmem:[%s0 + $0x4c] sm:$0xf]
  %v35 = vld [vmem:[%s0 + $0x50] sm:$0xf]
  %v36 = vld [vmem:[%s0 + $0x54] sm:$0xf]
  %v37 = vld [vmem:[%s0 + $0x58] sm:$0xf]
  %v38 = vld [vmem:[%s0 + $0x5c] sm:$0xf]
  %v39 = vld [vmem:[%s0 + $0x60] sm:$0xf]
  %v40 = vld [vmem:[%s0 + $0x64] sm:$0xf]
  %v41 = vld [vmem:[%s0 + $0x68] sm:$0xf]
  %v42 = vld [vmem:[%s0 + $0x6c] sm:$0xf]
  %v43 = vld [vmem:[%s0 + $0x70] sm:$0xf]
  %v44 = vld [vmem:[%s0 + $0x74] sm:$0xf]
  %v45 = vld [vmem:[%s0 + $0x78] sm:$0xf]
  %v46 = vld [vmem:[%s0 + $0x7c] sm:$0xf]
  %v47 = vld [vmem:[%s0 + $0x80] sm:$0xf]
  %v48 = vld [vmem:[%s0 + $0x84] sm:$0xf]
  %v49 = vld [vmem:[%s0 + $0x88] sm:$0xf]
  %v50 = vld [vmem:[%s0 + $0x8c] sm:$0xf]
  %v51 = vld [vmem:[%s0 + $0x90] sm:$0xf]
  %v52 = vld [vmem:[%s0 + $0x94] sm:$0xf]
  %v53 = vld [vmem:[%s0 + $0x98] sm:$0xf]
  %v54 = vld [vmem:[%s0 + $0x9c] sm:$0xf]
  %v55 = vld [vmem:[%s0 + $0xa0] sm:$0xf]
  %v56 = vld [vmem:[%s0 + $0xa4] sm:$0xf]
  %v57 = vld [vmem:[%s0 + $0xa8] sm:$0xf]
  %v58 = vld [vmem:[%s0 + $0xac] sm:$0xf]
  %v59 = vld [vmem:[%s0 + $0xb0] sm:$0xf]
  %v60 = vld [vmem:[%s0 + $0xb4] sm:$0xf]
  %v61 = vld [vmem:[%s0 + $0xb8] sm:$0xf]
  %v62 = vld [vmem:[%s0 + $0xbc] sm:$0xf]
  %v63 = vld [vmem:[%s0 + $0xc0] sm:$0xf]
  %v64 = vld [vmem:[%s0 + $0xc4] sm:$0xf]
  %v65 = vld [vmem:[%s0 + $0xc8] sm:$0xf]
  %v66 = vld [vmem:[%s0 + $0xcc] sm:$0xf]
  %v67 = vld [vmem:[%s0 + $0xd0] sm:$0xf]
  %v68 = vld [vmem:[%s0 + $0xd4] sm:$0xf]
  %v69 = vld [vmem:[%s0 + $0xd8] sm:$0xf]
  %v70 = vld [vmem:[%s0 + $0xdc] sm:$0xf]
  %v71 = vld [vmem:[%s0 + $0xe0] sm:$0xf]
  %v72 = vld [vmem:[%s0 + $0xe4] sm:$0xf]
  %v73 = vld [vmem:[%s0 + $0xe8] sm:$0xf]
  %v74 = vld [vmem:[%s0 + $0xec] sm:$0xf]
  %v75 = vld [vmem:[%s0 + $0xf0] sm:$0xf]
  %v76 = vld [vmem:[%s0 + $0xf4] sm:$0xf]
  %v77 = vld [vmem:[%s0 + $0xf8] sm:$0xf]
  %v78 = vld [vmem:[%s0 + $0xfc] sm:$0xf]
  %v79 = vld [vmem:[%s0 + $0x100] sm:$0xf]
  %v80 = vld [vmem:[%s0 + $0x104] sm:$0xf]
  %v81 = vld [vmem:[%s0 + $0x108] sm:$0xf]
  %v82 = vld [vmem:[%s0 + $0x10c] sm:$0xf]
  %v83 = vld [vmem:[%s0 + $0x110] sm:$0xf]
  %v84 = vld [vmem:[%s0 + $0x114] sm:$0xf]
  %v85 = vld [vmem:[%s0 + $0x118] sm:$0xf]
  %v86 = vld [vmem:[%s0 + $0x11c] sm:$0xf]
  %v87 = vld [vmem:[%s0 + $0x120] sm:$0xf]
  %v88 = vld [vmem:[%s0 + $0x124] sm:$0xf]
  %v89 = vld [vmem:[%s0 + $0x128] sm:$0xf]
  %v90 = vld [vmem:[%s0 + $0x12c] sm:$0xf]
  %v91 = vld [vmem:[%s0 + $0x130] sm:$0xf]
  %v92 = vld [vmem:[%s0 + $0x134] sm:$0xf]
  %v93 = vld [vmem:[%s0 + $0x138] sm:$0xf]
  %v94 = vld [vmem:[%s0 + $0x13c] sm:$0xf]
  %v95 = vld [vmem:[%s0 + $0x140] sm:$0xf]
  %v96 = vld [vmem:[%s0 + $0x144] sm:$0xf]
  %v97 = vld [vmem:[%s0 + $0x148] sm:$0xf]
  %v98 = vld [vmem:[%s0 + $0x14c] sm:$0xf]
  %v99 = vld [vmem:[%s0 + $0x150] sm:$0xf]
  %v100 = vld [vmem:[%s0 + $0x154] sm:$0xf]
  %v101 = vld [vmem:[%s0 + $0x158] sm:$0xf]
  %v102 = vld [vmem:[%s0 + $0x15c] sm:$0xf]
  %v103 = vld [vmem:[%s0 + $0x160] sm:$0xf]
  %v104 = vld [vmem:[%s0 + $0x164] sm:$0xf]
  %v105 = vld [vmem:[%s0 + $0x168] sm:$0xf]
  %v106 = vld [vmem:[%s0 + $0x16c] sm:$0xf]
  %v107 = vld [vmem:[%s0 + $0x170] sm:$0xf]
  %v108 = vld [vmem:[%s0 + $0x174] sm:$0xf]
  %v109 = vld [vmem:[%s0 + $0x178] sm:$0xf]
  %v110 = vld [vmem:[%s0 + $0x17c] sm:$0xf]
  %v111 = vld [vmem:[%s0 + $0x180] sm:$0xf]
  %v112 = vld [vmem:[%s0 + $0x184] sm:$0xf]
  %v113 = vld [vmem:[%s0 + $0x188] sm:$0xf]
  %v114 = vld [vmem:[%s0 + $0x18c] sm:$0xf]
  %v115 = vld [vmem:[%s0 + $0x190] sm:$0xf]
  %v116 = vld [vmem:[%s0 + $0x194] sm:$0xf]
  %v117 = vld [vmem:[%s0 + $0x198] sm:$0xf]
  %v118 = vld [vmem:[%s0 + $0x19c] sm:$0xf]
  %v119 = vld [vmem:[%s0 + $0x1a0] sm:$0xf]
  %v120 = vld [vmem:[%s0 + $0x1a4] sm:$0xf]
  %v121 = vld [vmem:[%s0 + $0x1a8] sm:$0xf]
  %v122 = vld [vmem:[%s0 + $0x1ac] sm:$0xf]
  %v123 = vld [vmem:[%s0 + $0x1b0] sm:$0xf]
  %v124 = vld [vmem:[%s0 + $0x1b4] sm:$0xf]
  %v125 = vld [vmem:[%s0 + $0x1b8] sm:$0xf]
  %v126 = vld [vmem:[%s0 + $0x1bc] sm:$0xf]
  %v127 = vld [vmem:[%s0 + $0x1c0] sm:$0xf]
  %v128 = vld [vmem:[%s0 + $0x1c4] sm:$0xf]
  %v129 = vld [vmem:[%s0 + $0x1c8] sm:$0xf]
  %v130 = vld [vmem:[%s0 + $0x1cc] sm:$0xf]
  %v131 = vld [vmem:[%s0 + $0x1d0] sm:$0xf]
  %v132 = vld [vmem:[%s0 + $0x1d4] sm:$0xf]
  %v133 = vld [vmem:[%s0 + $0x1d8] sm:$0xf]
  %v134 = vld [vmem:[%s0 + $0x1dc] sm:$0xf]
  %v135 = vld [vmem:[%s0 + $0x1e0] sm:$0xf]
  %v136 = vld [vmem:[%s0 + $0x1e4] sm:$0xf]
  %v137 = vld [vmem:[%s0 + $0x1e8] sm:$0xf]
  %v138 = vld [vmem:[%s0 + $0x1ec] sm:$0xf]
  %v139 = vld [vmem:[%s0 + $0x1f0] sm:$0xf]
  %v140 = vld [vmem:[%s0 + $0x1f4] sm:$0xf]
  %v141 = vld [vmem:[%s0 + $0x1f8] sm:$0xf]
  %v142 = vld [vmem:[%s0 + $0x1fc] sm:$0xf]
  %v143 = vld [vmem:[%s0 + $0x200] sm:$0xf]
  %v144 = vld [vmem:[%s0 + $0x204] sm:$0xf]
  %v145 = vld [vmem:[%s0 + $0x208] sm:$0xf]
  %v146 = vld [vmem:[%s0 + $0x20c] sm:$0xf]
  %v147 = vld [vmem:[%s0 + $0x210] sm:$0xf]
  %v148 = vld [vmem:[%s0 + $0x214] sm:$0xf]
  %v149 = vld [vmem:[%s0 + $0x218] sm:$0xf]
  %v150 = vld [vmem:[%s0 + $0x21c] sm:$0xf]
  %v151 = vld [vmem:[%s0 + $0x220] sm:$0xf]
  %v152 = vld [vmem:[%s0 + $0x224] sm:$0xf]
  %v153 = vld [vmem:[%s0 + $0x228] sm:$0xf]
  %v154 = vld [vmem:[%s0 + $0x22c] sm:$0xf]
  %v155 = vld [vmem:[%s0 + $0x230] sm:$0xf]
  %v156 = vld [vmem:[%s0 + $0x234] sm:$0xf]
  %v157 = vld [vmem:[%s0 + $0x238] sm:$0xf]
  %v158 = vld [vmem:[%s0 + $0x23c] sm:$0xf]
  %v159 = vld [vmem:[%s1] sm:$0xf]
  %v160 = vld [vmem:[%s1 + $0x4] sm:$0xf]
  %v161 = vld [vmem:[%s1 + $0x8] sm:$0xf]
  %v162 = vld [vmem:[%s1 + $0xc] sm:$0xf]
  %v307 = vunpack.c.l.b16 %v15
  %v308 = vunpack.c.l.b16 %v16
  %v309 = vunpack.c.l.b16 %v17
  %v310 = vunpack.c.l.b16 %v18
  %v311 = vunpack.c.l.b16 %v19
  %v312 = vunpack.c.l.b16 %v20
  %v313 = vunpack.c.l.b16 %v21
  %v314 = vunpack.c.l.b16 %v22
  %v315 = vunpack.c.l.b16 %v23
  %v316 = vunpack.c.l.b16 %v24
  %v317 = vunpack.c.l.b16 %v25
  %v318 = vunpack.c.l.b16 %v26
  %v319 = vunpack.c.l.b16 %v27
  %v320 = vunpack.c.l.b16 %v28
  %v321 = vunpack.c.l.b16 %v29
  %v322 = vunpack.c.l.b16 %v30
  %v323 = vunpack.c.l.b16 %v31
  %v324 = vunpack.c.l.b16 %v32
  %v325 = vunpack.c.l.b16 %v33
  %v326 = vunpack.c.l.b16 %v34
  %v327 = vunpack.c.l.b16 %v35
  %v328 = vunpack.c.l.b16 %v36
  %v329 = vunpack.c.l.b16 %v37
  %v330 = vunpack.c.l.b16 %v38
  %v331 = vunpack.c.l.b16 %v39
  %v332 = vunpack.c.l.b16 %v40
  %v333 = vunpack.c.l.b16 %v41
  %v334 = vunpack.c.l.b16 %v42
  %v335 = vunpack.c.l.b16 %v43
  %v336 = vunpack.c.l.b16 %v44
  %v337 = vunpack.c.l.b16 %v45
  %v338 = vunpack.c.l.b16 %v46
  %v339 = vunpack.c.l.b16 %v47
  %v340 = vunpack.c.l.b16 %v48
  %v341 = vunpack.c.l.b16 %v49
  %v342 = vunpack.c.l.b16 %v50
  %v343 = vunpack.c.l.b16 %v51
  %v344 = vunpack.c.l.b16 %v52
  %v345 = vunpack.c.l.b16 %v53
  %v346 = vunpack.c.l.b16 %v54
  %v347 = vunpack.c.l.b16 %v55
  %v348 = vunpack.c.l.b16 %v56
  %v349 = vunpack.c.l.b16 %v57
  %v350 = vunpack.c.l.b16 %v58
  %v351 = vunpack.c.l.b16 %v59
  %v352 = vunpack.c.l.b16 %v60
  %v353 = vunpack.c.l.b16 %v61
  %v354 = vunpack.c.l.b16 %v62
  %v355 = vunpack.c.l.b16 %v63
  %v356 = vunpack.c.l.b16 %v64
  %v357 = vunpack.c.l.b16 %v65
  %v358 = vunpack.c.l.b16 %v66
  %v359 = vunpack.c.l.b16 %v67
  %v360 = vunpack.c.l.b16 %v68
  %v361 = vunpack.c.l.b16 %v69
  %v362 = vunpack.c.l.b16 %v70
  %v363 = vunpack.c.l.b16 %v71
  %v364 = vunpack.c.l.b16 %v72
  %v365 = vunpack.c.l.b16 %v73
  %v366 = vunpack.c.l.b16 %v74
  %v367 = vunpack.c.l.b16 %v75
  %v368 = vunpack.c.l.b16 %v76
  %v369 = vunpack.c.l.b16 %v77
  %v370 = vunpack.c.l.b16 %v78
  %v371 = vunpack.c.l.b16 %v79
  %v372 = vunpack.c.l.b16 %v80
  %v373 = vunpack.c.l.b16 %v81
  %v374 = vunpack.c.l.b16 %v82
  %v375 = vunpack.c.l.b16 %v83
  %v376 = vunpack.c.l.b16 %v84
  %v377 = vunpack.c.l.b16 %v85
  %v378 = vunpack.c.l.b16 %v86
  %v379 = vunpack.c.l.b16 %v87
  %v380 = vunpack.c.l.b16 %v88
  %v381 = vunpack.c.l.b16 %v89
  %v382 = vunpack.c.l.b16 %v90
  %v383 = vunpack.c.l.b16 %v91
  %v384 = vunpack.c.l.b16 %v92
  %v385 = vunpack.c.l.b16 %v93
  %v386 = vunpack.c.l.b16 %v94
  %v387 = vunpack.c.l.b16 %v95
  %v388 = vunpack.c.l.b16 %v96
  %v389 = vunpack.c.l.b16 %v97
  %v390 = vunpack.c.l.b16 %v98
  %v391 = vunpack.c.l.b16 %v99
  %v392 = vunpack.c.l.b16 %v100
  %v393 = vunpack.c.l.b16 %v101
  %v394 = vunpack.c.l.b16 %v102
  %v395 = vunpack.c.l.b16 %v103
  %v396 = vunpack.c.l.b16 %v104
  %v397 = vunpack.c.l.b16 %v105
  %v398 = vunpack.c.l.b16 %v106
  %v399 = vunpack.c.l.b16 %v107
  %v400 = vunpack.c.l.b16 %v108
  %v401 = vunpack.c.l.b16 %v109
  %v402 = vunpack.c.l.b16 %v110
  %v403 = vunpack.c.l.b16 %v111
  %v404 = vunpack.c.l.b16 %v112
  %v405 = vunpack.c.l.b16 %v113
  %v406 = vunpack.c.l.b16 %v114
  %v407 = vunpack.c.l.b16 %v115
  %v408 = vunpack.c.l.b16 %v116
  %v409 = vunpack.c.l.b16 %v117
  %v410 = vunpack.c.l.b16 %v118
  %v411 = vunpack.c.l.b16 %v119
  %v412 = vunpack.c.l.b16 %v120
  %v413 = vunpack.c.l.b16 %v121
  %v414 = vunpack.c.l.b16 %v122
  %v415 = vunpack.c.l.b16 %v123
  %v416 = vunpack.c.l.b16 %v124
  %v417 = vunpack.c.l.b16 %v125
  %v418 = vunpack.c.l.b16 %v126
  %v419 = vunpack.c.l.b16 %v127
  %v420 = vunpack.c.l.b16 %v128
  %v421 = vunpack.c.l.b16 %v129
  %v422 = vunpack.c.l.b16 %v130
  %v423 = vunpack.c.l.b16 %v131
  %v424 = vunpack.c.l.b16 %v132
  %v425 = vunpack.c.l.b16 %v133
  %v426 = vunpack.c.l.b16 %v134
  %v427 = vunpack.c.l.b16 %v135
  %v428 = vunpack.c.l.b16 %v136
  %v429 = vunpack.c.l.b16 %v137
  %v430 = vunpack.c.l.b16 %v138
  %v431 = vunpack.c.l.b16 %v139
  %v432 = vunpack.c.l.b16 %v140
  %v433 = vunpack.c.l.b16 %v141
  %v434 = vunpack.c.l.b16 %v142
  %v435 = vunpack.c.l.b16 %v143
  %v436 = vunpack.c.l.b16 %v144
  %v437 = vunpack.c.l.b16 %v145
  %v438 = vunpack.c.l.b16 %v146
  %v439 = vunpack.c.l.b16 %v147
  %v440 = vunpack.c.l.b16 %v148
  %v441 = vunpack.c.l.b16 %v149
  %v442 = vunpack.c.l.b16 %v150
  %v443 = vunpack.c.l.b16 %v151
  %v444 = vunpack.c.l.b16 %v152
  %v445 = vunpack.c.l.b16 %v153
  %v446 = vunpack.c.l.b16 %v154
  %v447 = vunpack.c.l.b16 %v155
  %v448 = vunpack.c.l.b16 %v156
  %v449 = vunpack.c.l.b16 %v157
  %v450 = vunpack.c.l.b16 %v158
  %v451 = vpack.c.b16 %v308, %v307
  %v452 = vpack.c.b16 %v310, %v309
  %v453 = vpack.c.b16 %v312, %v311
  %v454 = vpack.c.b16 %v314, %v313
  %v455 = vpack.c.b16 %v316, %v315
  %v456 = vpack.c.b16 %v318, %v317
  %v457 = vpack.c.b16 %v320, %v319
  %v458 = vpack.c.b16 %v322, %v321
  %v459 = vpack.c.b16 %v324, %v323
  %v460 = vpack.c.b16 %v326, %v325
  %v461 = vpack.c.b16 %v328, %v327
  %v462 = vpack.c.b16 %v330, %v329
  %v463 = vpack.c.b16 %v332, %v331
  %v464 = vpack.c.b16 %v334, %v333
  %v465 = vpack.c.b16 %v336, %v335
  %v466 = vpack.c.b16 %v338, %v337
  %v467 = vpack.c.b16 %v340, %v339
  %v468 = vpack.c.b16 %v342, %v341
  %v469 = vpack.c.b16 %v344, %v343
  %v470 = vpack.c.b16 %v346, %v345
  %v471 = vpack.c.b16 %v348, %v347
  %v472 = vpack.c.b16 %v350, %v349
  %v473 = vpack.c.b16 %v352, %v351
  %v474 = vpack.c.b16 %v354, %v353
  %v475 = vpack.c.b16 %v356, %v355
  %v476 = vpack.c.b16 %v358, %v357
  %v477 = vpack.c.b16 %v360, %v359
  %v478 = vpack.c.b16 %v362, %v361
  %v479 = vpack.c.b16 %v364, %v363
  %v480 = vpack.c.b16 %v366, %v365
  %v481 = vpack.c.b16 %v368, %v367
  %v482 = vpack.c.b16 %v370, %v369
  %v483 = vpack.c.b16 %v372, %v371
  %v484 = vpack.c.b16 %v374, %v373
  %v485 = vpack.c.b16 %v376, %v375
  %v486 = vpack.c.b16 %v378, %v377
  %v487 = vpack.c.b16 %v380, %v379
  %v488 = vpack.c.b16 %v382, %v381
  %v489 = vpack.c.b16 %v384, %v383
  %v490 = vpack.c.b16 %v386, %v385
  %v491 = vpack.c.b16 %v388, %v387
  %v492 = vpack.c.b16 %v390, %v389
  %v493 = vpack.c.b16 %v392, %v391
  %v494 = vpack.c.b16 %v394, %v393
  %v495 = vpack.c.b16 %v396, %v395
  %v496 = vpack.c.b16 %v398, %v397
  %v497 = vpack.c.b16 %v400, %v399
  %v498 = vpack.c.b16 %v402, %v401
  %v499 = vpack.c.b16 %v404, %v403
  %v500 = vpack.c.b16 %v406, %v405
  %v501 = vpack.c.b16 %v408, %v407
  %v502 = vpack.c.b16 %v410, %v409
  %v503 = vpack.c.b16 %v412, %v411
  %v504 = vpack.c.b16 %v414, %v413
  %v505 = vpack.c.b16 %v416, %v415
  %v506 = vpack.c.b16 %v418, %v417
  %v507 = vpack.c.b16 %v420, %v419
  %v508 = vpack.c.b16 %v422, %v421
  %v509 = vpack.c.b16 %v424, %v423
  %v510 = vpack.c.b16 %v426, %v425
  %v511 = vpack.c.b16 %v428, %v427
  %v512 = vpack.c.b16 %v430, %v429
  %v513 = vpack.c.b16 %v432, %v431
  %v514 = vpack.c.b16 %v434, %v433
  %v515 = vpack.c.b16 %v436, %v435
  %v516 = vpack.c.b16 %v438, %v437
  %v517 = vpack.c.b16 %v440, %v439
  %v518 = vpack.c.b16 %v442, %v441
  %v519 = vpack.c.b16 %v444, %v443
  %v520 = vpack.c.b16 %v446, %v445
  %v521 = vpack.c.b16 %v448, %v447
  %v522 = vpack.c.b16 %v450, %v449
  %v527 = vunpack.c.l.b16 %v159
  %v528 = vunpack.c.l.b16 %v160
  %v529 = vunpack.c.l.b16 %v161
  %v530 = vunpack.c.l.b16 %v162
  %v531 = vpack.c.b16 %v528, %v527
  %v532 = vpack.c.b16 %v530, %v529
  %vm535 = vcmask 261120
  %v537 = vsel %vm535, %v451, 0
  %v540 = vsel %vm535, %v452, 0
  %v543 = vsel %vm535, %v453, 0
  %v546 = vsel %vm535, %v454, 0
  %v549 = vsel %vm535, %v455, 0
  %v552 = vsel %vm535, %v456, 0
  %v555 = vsel %vm535, %v457, 0
  %v558 = vsel %vm535, %v458, 0
  %v561 = vsel %vm535, %v459, 0
  %v564 = vsel %vm535, %v460, 0
  %v567 = vsel %vm535, %v461, 0
  %v570 = vsel %vm535, %v462, 0
  %v573 = vsel %vm535, %v463, 0
  %v576 = vsel %vm535, %v464, 0
  %v579 = vsel %vm535, %v465, 0
  %v582 = vsel %vm535, %v466, 0
  %v585 = vsel %vm535, %v467, 0
  %v588 = vsel %vm535, %v468, 0
  %v591 = vsel %vm535, %v469, 0
  %v594 = vsel %vm535, %v470, 0
  %v597 = vsel %vm535, %v471, 0
  %v600 = vsel %vm535, %v472, 0
  %v603 = vsel %vm535, %v473, 0
  %v606 = vsel %vm535, %v474, 0
  %v609 = vsel %vm535, %v475, 0
  %v612 = vsel %vm535, %v476, 0
  %v615 = vsel %vm535, %v477, 0
  %v618 = vsel %vm535, %v478, 0
  %v621 = vsel %vm535, %v479, 0
  %v624 = vsel %vm535, %v480, 0
  %v627 = vsel %vm535, %v481, 0
  %v630 = vsel %vm535, %v482, 0
  %v633 = vsel %vm535, %v483, 0
  %v636 = vsel %vm535, %v484, 0
  %v639 = vsel %vm535, %v485, 0
  %v642 = vsel %vm535, %v486, 0
  %v645 = vsel %vm535, %v487, 0
  %v648 = vsel %vm535, %v488, 0
  %v651 = vsel %vm535, %v489, 0
  %v654 = vsel %vm535, %v490, 0
  %v657 = vsel %vm535, %v491, 0
  %v660 = vsel %vm535, %v492, 0
  %v663 = vsel %vm535, %v493, 0
  %v666 = vsel %vm535, %v494, 0
  %v669 = vsel %vm535, %v495, 0
  %v672 = vsel %vm535, %v496, 0
  %v675 = vsel %vm535, %v497, 0
  %v678 = vsel %vm535, %v498, 0
  %v681 = vsel %vm535, %v499, 0
  %v684 = vsel %vm535, %v500, 0
  %v687 = vsel %vm535, %v501, 0
  %v690 = vsel %vm535, %v502, 0
  %v693 = vsel %vm535, %v503, 0
  %v696 = vsel %vm535, %v504, 0
  %v699 = vsel %vm535, %v505, 0
  %v702 = vsel %vm535, %v506, 0
  %v705 = vsel %vm535, %v507, 0
  %v708 = vsel %vm535, %v508, 0
  %v711 = vsel %vm535, %v509, 0
  %v714 = vsel %vm535, %v510, 0
  %v717 = vsel %vm535, %v511, 0
  %v720 = vsel %vm535, %v512, 0
  %v723 = vsel %vm535, %v513, 0
  %v726 = vsel %vm535, %v514, 0
  %v729 = vsel %vm535, %v515, 0
  %v732 = vsel %vm535, %v516, 0
  %v735 = vsel %vm535, %v517, 0
  %v738 = vsel %vm535, %v518, 0
  %v741 = vsel %vm535, %v519, 0
  %v744 = vsel %vm535, %v520, 0
  %v747 = vsel %vm535, %v521, 0
  %v750 = vsel %vm535, %v522, 0
  %752 = vmatpush.bf16.msra.mxu0 0
  %753 = vmatpush.bf16.msra.mxu0 0
  %754 = vmatpush.bf16.msra.mxu0 0
  %755 = vmatpush.bf16.msra.mxu0 0
  %756 = vmatpush.bf16.msra.mxu0 0
  %757 = vmatpush.bf16.msra.mxu0 0
  %758 = vmatpush.bf16.msra.mxu0 %v532
  %759 = vmatpush.bf16.msra.mxu0 %v531
  %760 = vmatmul.bf16.gmra.mxu0 %v537
  %v761 = vpop.f32.mrf.mxu0
  %v762 = vadd.f32 0.0, %v761
  %v763 = vpop.f32.mrf.mxu0
  %v764 = vadd.f32 0.0, %v763
  %765 = vmatmul.bf16.gmra.mxu0 %v540
  %v766 = vpop.f32.mrf.mxu0
  %v767 = vadd.f32 0.0, %v766
  %v768 = vpop.f32.mrf.mxu0
  %v769 = vadd.f32 0.0, %v768
  %770 = vmatmul.bf16.gmra.mxu0 %v543
  %v771 = vpop.f32.mrf.mxu0
  %v772 = vadd.f32 0.0, %v771
  %v773 = vpop.f32.mrf.mxu0
  %v774 = vadd.f32 0.0, %v773
  %775 = vmatmul.bf16.gmra.mxu0 %v546
  %v776 = vpop.f32.mrf.mxu0
  %v777 = vadd.f32 0.0, %v776
  %v778 = vpop.f32.mrf.mxu0
  %v779 = vadd.f32 0.0, %v778
  %780 = vmatmul.bf16.gmra.mxu0 %v549
  %v781 = vpop.f32.mrf.mxu0
  %v782 = vadd.f32 0.0, %v781
  %v783 = vpop.f32.mrf.mxu0
  %v784 = vadd.f32 0.0, %v783
  %785 = vmatmul.bf16.gmra.mxu0 %v552
  %v786 = vpop.f32.mrf.mxu0
  %v787 = vadd.f32 0.0, %v786
  %v788 = vpop.f32.mrf.mxu0
  %v789 = vadd.f32 0.0, %v788
  %790 = vmatmul.bf16.gmra.mxu0 %v555
  %v791 = vpop.f32.mrf.mxu0
  %v792 = vadd.f32 0.0, %v791
  %v793 = vpop.f32.mrf.mxu0
  %v794 = vadd.f32 0.0, %v793
  %795 = vmatmul.bf16.gmra.mxu0 %v558
  %v796 = vpop.f32.mrf.mxu0
  %v797 = vadd.f32 0.0, %v796
  %v798 = vpop.f32.mrf.mxu0
  %v799 = vadd.f32 0.0, %v798
  %800 = vmatmul.bf16.gmra.mxu0 %v561
  %v801 = vpop.f32.mrf.mxu0
  %v802 = vadd.f32 0.0, %v801
  %v803 = vpop.f32.mrf.mxu0
  %v804 = vadd.f32 0.0, %v803
  %805 = vmatmul.bf16.gmra.mxu0 %v564
  %v806 = vpop.f32.mrf.mxu0
  %v807 = vadd.f32 0.0, %v806
  %v808 = vpop.f32.mrf.mxu0
  %v809 = vadd.f32 0.0, %v808
  %810 = vmatmul.bf16.gmra.mxu0 %v567
  %v811 = vpop.f32.mrf.mxu0
  %v812 = vadd.f32 0.0, %v811
  %v813 = vpop.f32.mrf.mxu0
  %v814 = vadd.f32 0.0, %v813
  %815 = vmatmul.bf16.gmra.mxu0 %v570
  %v816 = vpop.f32.mrf.mxu0
  %v817 = vadd.f32 0.0, %v816
  %v818 = vpop.f32.mrf.mxu0
  %v819 = vadd.f32 0.0, %v818
  %820 = vmatmul.bf16.gmra.mxu0 %v573
  %v821 = vpop.f32.mrf.mxu0
  %v822 = vadd.f32 0.0, %v821
  %v823 = vpop.f32.mrf.mxu0
  %v824 = vadd.f32 0.0, %v823
  %825 = vmatmul.bf16.gmra.mxu0 %v576
  %v826 = vpop.f32.mrf.mxu0
  %v827 = vadd.f32 0.0, %v826
  %v828 = vpop.f32.mrf.mxu0
  %v829 = vadd.f32 0.0, %v828
  %830 = vmatmul.bf16.gmra.mxu0 %v579
  %v831 = vpop.f32.mrf.mxu0
  %v832 = vadd.f32 0.0, %v831
  %v833 = vpop.f32.mrf.mxu0
  %v834 = vadd.f32 0.0, %v833
  %835 = vmatmul.bf16.gmra.mxu0 %v582
  %v836 = vpop.f32.mrf.mxu0
  %v837 = vadd.f32 0.0, %v836
  %v838 = vpop.f32.mrf.mxu0
  %v839 = vadd.f32 0.0, %v838
  %840 = vmatmul.bf16.gmra.mxu0 %v585
  %v841 = vpop.f32.mrf.mxu0
  %v842 = vadd.f32 0.0, %v841
  %v843 = vpop.f32.mrf.mxu0
  %v844 = vadd.f32 0.0, %v843
  %845 = vmatmul.bf16.gmra.mxu0 %v588
  %v846 = vpop.f32.mrf.mxu0
  %v847 = vadd.f32 0.0, %v846
  %v848 = vpop.f32.mrf.mxu0
  %v849 = vadd.f32 0.0, %v848
  %850 = vmatmul.bf16.gmra.mxu0 %v591
  %v851 = vpop.f32.mrf.mxu0
  %v852 = vadd.f32 0.0, %v851
  %v853 = vpop.f32.mrf.mxu0
  %v854 = vadd.f32 0.0, %v853
  %855 = vmatmul.bf16.gmra.mxu0 %v594
  %v856 = vpop.f32.mrf.mxu0
  %v857 = vadd.f32 0.0, %v856
  %v858 = vpop.f32.mrf.mxu0
  %v859 = vadd.f32 0.0, %v858
  %860 = vmatmul.bf16.gmra.mxu0 %v597
  %v861 = vpop.f32.mrf.mxu0
  %v862 = vadd.f32 0.0, %v861
  %v863 = vpop.f32.mrf.mxu0
  %v864 = vadd.f32 0.0, %v863
  %865 = vmatmul.bf16.gmra.mxu0 %v600
  %v866 = vpop.f32.mrf.mxu0
  %v867 = vadd.f32 0.0, %v866
  %v868 = vpop.f32.mrf.mxu0
  %v869 = vadd.f32 0.0, %v868
  %870 = vmatmul.bf16.gmra.mxu0 %v603
  %v871 = vpop.f32.mrf.mxu0
  %v872 = vadd.f32 0.0, %v871
  %v873 = vpop.f32.mrf.mxu0
  %v874 = vadd.f32 0.0, %v873
  %875 = vmatmul.bf16.gmra.mxu0 %v606
  %v876 = vpop.f32.mrf.mxu0
  %v877 = vadd.f32 0.0, %v876
  %v878 = vpop.f32.mrf.mxu0
  %v879 = vadd.f32 0.0, %v878
  %880 = vmatmul.bf16.gmra.mxu0 %v609
  %v881 = vpop.f32.mrf.mxu0
  %v882 = vadd.f32 0.0, %v881
  %v883 = vpop.f32.mrf.mxu0
  %v884 = vadd.f32 0.0, %v883
  %885 = vmatmul.bf16.gmra.mxu0 %v612
  %v886 = vpop.f32.mrf.mxu0
  %v887 = vadd.f32 0.0, %v886
  %v888 = vpop.f32.mrf.mxu0
  %v889 = vadd.f32 0.0, %v888
  %890 = vmatmul.bf16.gmra.mxu0 %v615
  %v891 = vpop.f32.mrf.mxu0
  %v892 = vadd.f32 0.0, %v891
  %v893 = vpop.f32.mrf.mxu0
  %v894 = vadd.f32 0.0, %v893
  %895 = vmatmul.bf16.gmra.mxu0 %v618
  %v896 = vpop.f32.mrf.mxu0
  %v897 = vadd.f32 0.0, %v896
  %v898 = vpop.f32.mrf.mxu0
  %v899 = vadd.f32 0.0, %v898
  %900 = vmatmul.bf16.gmra.mxu0 %v621
  %v901 = vpop.f32.mrf.mxu0
  %v902 = vadd.f32 0.0, %v901
  %v903 = vpop.f32.mrf.mxu0
  %v904 = vadd.f32 0.0, %v903
  %905 = vmatmul.bf16.gmra.mxu0 %v624
  %v906 = vpop.f32.mrf.mxu0
  %v907 = vadd.f32 0.0, %v906
  %v908 = vpop.f32.mrf.mxu0
  %v909 = vadd.f32 0.0, %v908
  %910 = vmatmul.bf16.gmra.mxu0 %v627
  %v911 = vpop.f32.mrf.mxu0
  %v912 = vadd.f32 0.0, %v911
  %v913 = vpop.f32.mrf.mxu0
  %v914 = vadd.f32 0.0, %v913
  %915 = vmatmul.bf16.gmra.mxu0 %v630
  %v916 = vpop.f32.mrf.mxu0
  %v917 = vadd.f32 0.0, %v916
  %v918 = vpop.f32.mrf.mxu0
  %v919 = vadd.f32 0.0, %v918
  %920 = vmatmul.bf16.gmra.mxu0 %v633
  %v921 = vpop.f32.mrf.mxu0
  %v922 = vadd.f32 0.0, %v921
  %v923 = vpop.f32.mrf.mxu0
  %v924 = vadd.f32 0.0, %v923
  %925 = vmatmul.bf16.gmra.mxu0 %v636
  %v926 = vpop.f32.mrf.mxu0
  %v927 = vadd.f32 0.0, %v926
  %v928 = vpop.f32.mrf.mxu0
  %v929 = vadd.f32 0.0, %v928
  %930 = vmatmul.bf16.gmra.mxu0 %v639
  %v931 = vpop.f32.mrf.mxu0
  %v932 = vadd.f32 0.0, %v931
  %v933 = vpop.f32.mrf.mxu0
  %v934 = vadd.f32 0.0, %v933
  %935 = vmatmul.bf16.gmra.mxu0 %v642
  %v936 = vpop.f32.mrf.mxu0
  %v937 = vadd.f32 0.0, %v936
  %v938 = vpop.f32.mrf.mxu0
  %v939 = vadd.f32 0.0, %v938
  %940 = vmatmul.bf16.gmra.mxu0 %v645
  %v941 = vpop.f32.mrf.mxu0
  %v942 = vadd.f32 0.0, %v941
  %v943 = vpop.f32.mrf.mxu0
  %v944 = vadd.f32 0.0, %v943
  %945 = vmatmul.bf16.gmra.mxu0 %v648
  %v946 = vpop.f32.mrf.mxu0
  %v947 = vadd.f32 0.0, %v946
  %v948 = vpop.f32.mrf.mxu0
  %v949 = vadd.f32 0.0, %v948
  %950 = vmatmul.bf16.gmra.mxu0 %v651
  %v951 = vpop.f32.mrf.mxu0
  %v952 = vadd.f32 0.0, %v951
  %v953 = vpop.f32.mrf.mxu0
  %v954 = vadd.f32 0.0, %v953
  %955 = vmatmul.bf16.gmra.mxu0 %v654
  %v956 = vpop.f32.mrf.mxu0
  %v957 = vadd.f32 0.0, %v956
  %v958 = vpop.f32.mrf.mxu0
  %v959 = vadd.f32 0.0, %v958
  %960 = vmatmul.bf16.gmra.mxu0 %v657
  %v961 = vpop.f32.mrf.mxu0
  %v962 = vadd.f32 0.0, %v961
  %v963 = vpop.f32.mrf.mxu0
  %v964 = vadd.f32 0.0, %v963
  %965 = vmatmul.bf16.gmra.mxu0 %v660
  %v966 = vpop.f32.mrf.mxu0
  %v967 = vadd.f32 0.0, %v966
  %v968 = vpop.f32.mrf.mxu0
  %v969 = vadd.f32 0.0, %v968
  %970 = vmatmul.bf16.gmra.mxu0 %v663
  %v971 = vpop.f32.mrf.mxu0
  %v972 = vadd.f32 0.0, %v971
  %v973 = vpop.f32.mrf.mxu0
  %v974 = vadd.f32 0.0, %v973
  %975 = vmatmul.bf16.gmra.mxu0 %v666
  %v976 = vpop.f32.mrf.mxu0
  %v977 = vadd.f32 0.0, %v976
  %v978 = vpop.f32.mrf.mxu0
  %v979 = vadd.f32 0.0, %v978
  %980 = vmatmul.bf16.gmra.mxu0 %v669
  %v981 = vpop.f32.mrf.mxu0
  %v982 = vadd.f32 0.0, %v981
  %v983 = vpop.f32.mrf.mxu0
  %v984 = vadd.f32 0.0, %v983
  %985 = vmatmul.bf16.gmra.mxu0 %v672
  %v986 = vpop.f32.mrf.mxu0
  %v987 = vadd.f32 0.0, %v986
  %v988 = vpop.f32.mrf.mxu0
  %v989 = vadd.f32 0.0, %v988
  %990 = vmatmul.bf16.gmra.mxu0 %v675
  %v991 = vpop.f32.mrf.mxu0
  %v992 = vadd.f32 0.0, %v991
  %v993 = vpop.f32.mrf.mxu0
  %v994 = vadd.f32 0.0, %v993
  %995 = vmatmul.bf16.gmra.mxu0 %v678
  %v996 = vpop.f32.mrf.mxu0
  %v997 = vadd.f32 0.0, %v996
  %v998 = vpop.f32.mrf.mxu0
  %v999 = vadd.f32 0.0, %v998
  %1000 = vmatmul.bf16.gmra.mxu0 %v681
  %v1001 = vpop.f32.mrf.mxu0
  %v1002 = vadd.f32 0.0, %v1001
  %v1003 = vpop.f32.mrf.mxu0
  %v1004 = vadd.f32 0.0, %v1003
  %1005 = vmatmul.bf16.gmra.mxu0 %v684
  %v1006 = vpop.f32.mrf.mxu0
  %v1007 = vadd.f32 0.0, %v1006
  %v1008 = vpop.f32.mrf.mxu0
  %v1009 = vadd.f32 0.0, %v1008
  %1010 = vmatmul.bf16.gmra.mxu0 %v687
  %v1011 = vpop.f32.mrf.mxu0
  %v1012 = vadd.f32 0.0, %v1011
  %v1013 = vpop.f32.mrf.mxu0
  %v1014 = vadd.f32 0.0, %v1013
  %1015 = vmatmul.bf16.gmra.mxu0 %v690
  %v1016 = vpop.f32.mrf.mxu0
  %v1017 = vadd.f32 0.0, %v1016
  %v1018 = vpop.f32.mrf.mxu0
  %v1019 = vadd.f32 0.0, %v1018
  %1020 = vmatmul.bf16.gmra.mxu0 %v693
  %v1021 = vpop.f32.mrf.mxu0
  %v1022 = vadd.f32 0.0, %v1021
  %v1023 = vpop.f32.mrf.mxu0
  %v1024 = vadd.f32 0.0, %v1023
  %1025 = vmatmul.bf16.gmra.mxu0 %v696
  %v1026 = vpop.f32.mrf.mxu0
  %v1027 = vadd.f32 0.0, %v1026
  %v1028 = vpop.f32.mrf.mxu0
  %v1029 = vadd.f32 0.0, %v1028
  %1030 = vmatmul.bf16.gmra.mxu0 %v699
  %v1031 = vpop.f32.mrf.mxu0
  %v1032 = vadd.f32 0.0, %v1031
  %v1033 = vpop.f32.mrf.mxu0
  %v1034 = vadd.f32 0.0, %v1033
  %1035 = vmatmul.bf16.gmra.mxu0 %v702
  %v1036 = vpop.f32.mrf.mxu0
  %v1037 = vadd.f32 0.0, %v1036
  %v1038 = vpop.f32.mrf.mxu0
  %v1039 = vadd.f32 0.0, %v1038
  %1040 = vmatmul.bf16.gmra.mxu0 %v705
  %v1041 = vpop.f32.mrf.mxu0
  %v1042 = vadd.f32 0.0, %v1041
  %v1043 = vpop.f32.mrf.mxu0
  %v1044 = vadd.f32 0.0, %v1043
  %1045 = vmatmul.bf16.gmra.mxu0 %v708
  %v1046 = vpop.f32.mrf.mxu0
  %v1047 = vadd.f32 0.0, %v1046
  %v1048 = vpop.f32.mrf.mxu0
  %v1049 = vadd.f32 0.0, %v1048
  %1050 = vmatmul.bf16.gmra.mxu0 %v711
  %v1051 = vpop.f32.mrf.mxu0
  %v1052 = vadd.f32 0.0, %v1051
  %v1053 = vpop.f32.mrf.mxu0
  %v1054 = vadd.f32 0.0, %v1053
  %1055 = vmatmul.bf16.gmra.mxu0 %v714
  %v1056 = vpop.f32.mrf.mxu0
  %v1057 = vadd.f32 0.0, %v1056
  %v1058 = vpop.f32.mrf.mxu0
  %v1059 = vadd.f32 0.0, %v1058
  %1060 = vmatmul.bf16.gmra.mxu0 %v717
  %v1061 = vpop.f32.mrf.mxu0
  %v1062 = vadd.f32 0.0, %v1061
  %v1063 = vpop.f32.mrf.mxu0
  %v1064 = vadd.f32 0.0, %v1063
  %1065 = vmatmul.bf16.gmra.mxu0 %v720
  %v1066 = vpop.f32.mrf.mxu0
  %v1067 = vadd.f32 0.0, %v1066
  %v1068 = vpop.f32.mrf.mxu0
  %v1069 = vadd.f32 0.0, %v1068
  %1070 = vmatmul.bf16.gmra.mxu0 %v723
  %v1071 = vpop.f32.mrf.mxu0
  %v1072 = vadd.f32 0.0, %v1071
  %v1073 = vpop.f32.mrf.mxu0
  %v1074 = vadd.f32 0.0, %v1073
  %1075 = vmatmul.bf16.gmra.mxu0 %v726
  %v1076 = vpop.f32.mrf.mxu0
  %v1077 = vadd.f32 0.0, %v1076
  %v1078 = vpop.f32.mrf.mxu0
  %v1079 = vadd.f32 0.0, %v1078
  %1080 = vmatmul.bf16.gmra.mxu0 %v729
  %v1081 = vpop.f32.mrf.mxu0
  %v1082 = vadd.f32 0.0, %v1081
  %v1083 = vpop.f32.mrf.mxu0
  %v1084 = vadd.f32 0.0, %v1083
  %1085 = vmatmul.bf16.gmra.mxu0 %v732
  %v1086 = vpop.f32.mrf.mxu0
  %v1087 = vadd.f32 0.0, %v1086
  %v1088 = vpop.f32.mrf.mxu0
  %v1089 = vadd.f32 0.0, %v1088
  %1090 = vmatmul.bf16.gmra.mxu0 %v735
  %v1091 = vpop.f32.mrf.mxu0
  %v1092 = vadd.f32 0.0, %v1091
  %v1093 = vpop.f32.mrf.mxu0
  %v1094 = vadd.f32 0.0, %v1093
  %1095 = vmatmul.bf16.gmra.mxu0 %v738
  %v1096 = vpop.f32.mrf.mxu0
  %v1097 = vadd.f32 0.0, %v1096
  %v1098 = vpop.f32.mrf.mxu0
  %v1099 = vadd.f32 0.0, %v1098
  %1100 = vmatmul.bf16.gmra.mxu0 %v741
  %v1101 = vpop.f32.mrf.mxu0
  %v1102 = vadd.f32 0.0, %v1101
  %v1103 = vpop.f32.mrf.mxu0
  %v1104 = vadd.f32 0.0, %v1103
  %1105 = vmatmul.bf16.gmra.mxu0 %v744
  %v1106 = vpop.f32.mrf.mxu0
  %v1107 = vadd.f32 0.0, %v1106
  %v1108 = vpop.f32.mrf.mxu0
  %v1109 = vadd.f32 0.0, %v1108
  %1110 = vmatmul.bf16.gmra.mxu0 %v747
  %v1111 = vpop.f32.mrf.mxu0
  %v1112 = vadd.f32 0.0, %v1111
  %v1113 = vpop.f32.mrf.mxu0
  %v1114 = vadd.f32 0.0, %v1113
  %1115 = vmatmul.bf16.gmra.mxu0 %v750
  %v1116 = vpop.f32.mrf.mxu0
  %v1117 = vadd.f32 0.0, %v1116
  %v1118 = vpop.f32.mrf.mxu0
  %v1119 = vadd.f32 0.0, %v1118
  %1120 = vdwg.mxu0
  %v1121 = vmax.f32 %v762, %v852
  %v1122 = vmax.f32 %v764, %v854
  %v1123 = vmax.f32 %v767, %v857
  %v1124 = vmax.f32 %v769, %v859
  %v1125 = vmax.f32 %v772, %v862
  %v1126 = vmax.f32 %v774, %v864
  %v1127 = vmax.f32 %v777, %v867
  %v1128 = vmax.f32 %v779, %v869
  %v1129 = vmax.f32 %v782, %v872
  %v1130 = vmax.f32 %v784, %v874
  %v1131 = vmax.f32 %v787, %v877
  %v1132 = vmax.f32 %v789, %v879
  %v1133 = vmax.f32 %v792, %v882
  %v1134 = vmax.f32 %v794, %v884
  %v1135 = vmax.f32 %v797, %v887
  %v1136 = vmax.f32 %v799, %v889
  %v1137 = vmax.f32 %v802, %v892
  %v1138 = vmax.f32 %v804, %v894
  %v1139 = vmax.f32 %v807, %v897
  %v1140 = vmax.f32 %v809, %v899
  %v1141 = vmax.f32 %v812, %v902
  %v1142 = vmax.f32 %v814, %v904
  %v1143 = vmax.f32 %v817, %v907
  %v1144 = vmax.f32 %v819, %v909
  %v1145 = vmax.f32 %v822, %v912
  %v1146 = vmax.f32 %v824, %v914
  %v1147 = vmax.f32 %v827, %v917
  %v1148 = vmax.f32 %v829, %v919
  %v1149 = vmax.f32 %v832, %v922
  %v1150 = vmax.f32 %v834, %v924
  %v1151 = vmax.f32 %v837, %v927
  %v1152 = vmax.f32 %v839, %v929
  %v1153 = vmax.f32 %v842, %v932
  %v1154 = vmax.f32 %v844, %v934
  %v1155 = vmax.f32 %v847, %v937
  %v1156 = vmax.f32 %v849, %v939
  %v1157 = vmax.f32 %v942, %v1032
  %v1158 = vmax.f32 %v944, %v1034
  %v1159 = vmax.f32 %v947, %v1037
  %v1160 = vmax.f32 %v949, %v1039
  %v1161 = vmax.f32 %v952, %v1042
  %v1162 = vmax.f32 %v954, %v1044
  %v1163 = vmax.f32 %v957, %v1047
  %v1164 = vmax.f32 %v959, %v1049
  %v1165 = vmax.f32 %v962, %v1052
  %v1166 = vmax.f32 %v964, %v1054
  %v1167 = vmax.f32 %v967, %v1057
  %v1168 = vmax.f32 %v969, %v1059
  %v1169 = vmax.f32 %v972, %v1062
  %v1170 = vmax.f32 %v974, %v1064
  %v1171 = vmax.f32 %v977, %v1067
  %v1172 = vmax.f32 %v979, %v1069
  %v1173 = vmax.f32 %v982, %v1072
  %v1174 = vmax.f32 %v984, %v1074
  %v1175 = vmax.f32 %v987, %v1077
  %v1176 = vmax.f32 %v989, %v1079
  %v1177 = vmax.f32 %v992, %v1082
  %v1178 = vmax.f32 %v994, %v1084
  %v1179 = vmax.f32 %v997, %v1087
  %v1180 = vmax.f32 %v999, %v1089
  %v1181 = vmax.f32 %v1002, %v1092
  %v1182 = vmax.f32 %v1004, %v1094
  %v1183 = vmax.f32 %v1007, %v1097
  %v1184 = vmax.f32 %v1009, %v1099
  %v1185 = vmax.f32 %v1012, %v1102
  %v1186 = vmax.f32 %v1014, %v1104
  %v1187 = vmax.f32 %v1017, %v1107
  %v1188 = vmax.f32 %v1019, %v1109
  %v1189 = vmax.f32 %v1022, %v1112
  %v1190 = vmax.f32 %v1024, %v1114
  %v1191 = vmax.f32 %v1027, %v1117
  %v1192 = vmax.f32 %v1029, %v1119
  %v1193 = vmax.f32 %v1121, %v1157
  %v1194 = vmax.f32 %v1122, %v1158
  %v1195 = vmax.f32 %v1123, %v1159
  %v1196 = vmax.f32 %v1124, %v1160
  %v1197 = vmax.f32 %v1125, %v1161
  %v1198 = vmax.f32 %v1126, %v1162
  %v1199 = vmax.f32 %v1127, %v1163
  %v1200 = vmax.f32 %v1128, %v1164
  %v1201 = vmax.f32 %v1129, %v1165
  %v1202 = vmax.f32 %v1130, %v1166
  %v1203 = vmax.f32 %v1131, %v1167
  %v1204 = vmax.f32 %v1132, %v1168
  %v1205 = vmax.f32 %v1133, %v1169
  %v1206 = vmax.f32 %v1134, %v1170
  %v1207 = vmax.f32 %v1135, %v1171
  %v1208 = vmax.f32 %v1136, %v1172
  %v1209 = vmax.f32 %v1137, %v1173
  %v1210 = vmax.f32 %v1138, %v1174
  %v1211 = vmax.f32 %v1139, %v1175
  %v1212 = vmax.f32 %v1140, %v1176
  %v1213 = vmax.f32 %v1141, %v1177
  %v1214 = vmax.f32 %v1142, %v1178
  %v1215 = vmax.f32 %v1143, %v1179
  %v1216 = vmax.f32 %v1144, %v1180
  %v1217 = vmax.f32 %v1145, %v1181
  %v1218 = vmax.f32 %v1146, %v1182
  %v1219 = vmax.f32 %v1147, %v1183
  %v1220 = vmax.f32 %v1148, %v1184
  %v1221 = vmax.f32 %v1149, %v1185
  %v1222 = vmax.f32 %v1150, %v1186
  %v1223 = vmax.f32 %v1151, %v1187
  %v1224 = vmax.f32 %v1152, %v1188
  %v1225 = vmax.f32 %v1153, %v1189
  %v1226 = vmax.f32 %v1154, %v1190
  %v1227 = vmax.f32 %v1155, %v1191
  %v1228 = vmax.f32 %v1156, %v1192
  %v1229 = vld [vmem:[%s2] sm:$0x1]
  %v1231 = vperm.slane %v1229, 0
  %v1233 = vadd.f32 %v1193, %v1231
  %v1234 = vadd.f32 %v1194, %v1231
  %v1235 = vadd.f32 %v1195, %v1231
  %v1236 = vadd.f32 %v1196, %v1231
  %v1237 = vadd.f32 %v1197, %v1231
  %v1238 = vadd.f32 %v1198, %v1231
  %v1239 = vadd.f32 %v1199, %v1231
  %v1240 = vadd.f32 %v1200, %v1231
  %v1241 = vadd.f32 %v1201, %v1231
  %v1242 = vadd.f32 %v1202, %v1231
  %v1243 = vadd.f32 %v1203, %v1231
  %v1244 = vadd.f32 %v1204, %v1231
  %v1245 = vadd.f32 %v1205, %v1231
  %v1246 = vadd.f32 %v1206, %v1231
  %v1247 = vadd.f32 %v1207, %v1231
  %v1248 = vadd.f32 %v1208, %v1231
  %v1249 = vadd.f32 %v1209, %v1231
  %v1250 = vadd.f32 %v1210, %v1231
  %v1251 = vadd.f32 %v1211, %v1231
  %v1252 = vadd.f32 %v1212, %v1231
  %v1253 = vadd.f32 %v1213, %v1231
  %v1254 = vadd.f32 %v1214, %v1231
  %v1255 = vadd.f32 %v1215, %v1231
  %v1256 = vadd.f32 %v1216, %v1231
  %v1257 = vadd.f32 %v1217, %v1231
  %v1258 = vadd.f32 %v1218, %v1231
  %v1259 = vadd.f32 %v1219, %v1231
  %v1260 = vadd.f32 %v1220, %v1231
  %v1261 = vadd.f32 %v1221, %v1231
  %v1262 = vadd.f32 %v1222, %v1231
  %v1263 = vadd.f32 %v1223, %v1231
  %v1264 = vadd.f32 %v1224, %v1231
  %v1265 = vadd.f32 %v1225, %v1231
  %v1266 = vadd.f32 %v1226, %v1231
  %v1267 = vadd.f32 %v1227, %v1231
  %v1268 = vadd.f32 %v1228, %v1231
  %v1269 = vmax.f32 %v1233, 0.0
  %v1270 = vmax.f32 %v1234, 0.0
  %v1271 = vmax.f32 %v1235, 0.0
  %v1272 = vmax.f32 %v1236, 0.0
  %v1273 = vmax.f32 %v1237, 0.0
  %v1274 = vmax.f32 %v1238, 0.0
  %v1275 = vmax.f32 %v1239, 0.0
  %v1276 = vmax.f32 %v1240, 0.0
  %v1277 = vmax.f32 %v1241, 0.0
  %v1278 = vmax.f32 %v1242, 0.0
  %v1279 = vmax.f32 %v1243, 0.0
  %v1280 = vmax.f32 %v1244, 0.0
  %v1281 = vmax.f32 %v1245, 0.0
  %v1282 = vmax.f32 %v1246, 0.0
  %v1283 = vmax.f32 %v1247, 0.0
  %v1284 = vmax.f32 %v1248, 0.0
  %v1285 = vmax.f32 %v1249, 0.0
  %v1286 = vmax.f32 %v1250, 0.0
  %v1287 = vmax.f32 %v1251, 0.0
  %v1288 = vmax.f32 %v1252, 0.0
  %v1289 = vmax.f32 %v1253, 0.0
  %v1290 = vmax.f32 %v1254, 0.0
  %v1291 = vmax.f32 %v1255, 0.0
  %v1292 = vmax.f32 %v1256, 0.0
  %v1293 = vmax.f32 %v1257, 0.0
  %v1294 = vmax.f32 %v1258, 0.0
  %v1295 = vmax.f32 %v1259, 0.0
  %v1296 = vmax.f32 %v1260, 0.0
  %v1297 = vmax.f32 %v1261, 0.0
  %v1298 = vmax.f32 %v1262, 0.0
  %v1299 = vmax.f32 %v1263, 0.0
  %v1300 = vmax.f32 %v1264, 0.0
  %v1301 = vmax.f32 %v1265, 0.0
  %v1302 = vmax.f32 %v1266, 0.0
  %v1303 = vmax.f32 %v1267, 0.0
  %v1304 = vmax.f32 %v1268, 0.0
  %1305 = vst [vmem:[%s3] sm:$0xff] %v1269
  %1306 = vst [vmem:[%s3 + $0x8] sm:$0xff] %v1270
  %1307 = vst [vmem:[%s3 + $0x10] sm:$0xff] %v1271
  %1308 = vst [vmem:[%s3 + $0x18] sm:$0xff] %v1272
  %1309 = vst [vmem:[%s3 + $0x20] sm:$0xff] %v1273
  %1310 = vst [vmem:[%s3 + $0x28] sm:$0xff] %v1274
  %1311 = vst [vmem:[%s3 + $0x30] sm:$0xff] %v1275
  %1312 = vst [vmem:[%s3 + $0x38] sm:$0xff] %v1276
  %1313 = vst [vmem:[%s3 + $0x40] sm:$0xff] %v1277
  %1314 = vst [vmem:[%s3 + $0x48] sm:$0xff] %v1278
  %1315 = vst [vmem:[%s3 + $0x50] sm:$0xff] %v1279
  %1316 = vst [vmem:[%s3 + $0x58] sm:$0xff] %v1280
  %1317 = vst [vmem:[%s3 + $0x60] sm:$0xff] %v1281
  %1318 = vst [vmem:[%s3 + $0x68] sm:$0xff] %v1282
  %1319 = vst [vmem:[%s3 + $0x70] sm:$0xff] %v1283
  %1320 = vst [vmem:[%s3 + $0x78] sm:$0xff] %v1284
  %1321 = vst [vmem:[%s3 + $0x80] sm:$0xff] %v1285
  %1322 = vst [vmem:[%s3 + $0x88] sm:$0xff] %v1286
  %1323 = vst [vmem:[%s3 + $0x90] sm:$0xff] %v1287
  %1324 = vst [vmem:[%s3 + $0x98] sm:$0xff] %v1288
  %1325 = vst [vmem:[%s3 + $0xa0] sm:$0xff] %v1289
  %1326 = vst [vmem:[%s3 + $0xa8] sm:$0xff] %v1290
  %1327 = vst [vmem:[%s3 + $0xb0] sm:$0xff] %v1291
  %1328 = vst [vmem:[%s3 + $0xb8] sm:$0xff] %v1292
  %1329 = vst [vmem:[%s3 + $0xc0] sm:$0xff] %v1293
  %1330 = vst [vmem:[%s3 + $0xc8] sm:$0xff] %v1294
  %1331 = vst [vmem:[%s3 + $0xd0] sm:$0xff] %v1295
  %1332 = vst [vmem:[%s3 + $0xd8] sm:$0xff] %v1296
  %1333 = vst [vmem:[%s3 + $0xe0] sm:$0xff] %v1297
  %1334 = vst [vmem:[%s3 + $0xe8] sm:$0xff] %v1298
  %1335 = vst [vmem:[%s3 + $0xf0] sm:$0xff] %v1299
  %1336 = vst [vmem:[%s3 + $0xf8] sm:$0xff] %v1300
  %1337 = vst [vmem:[%s3 + $0x100] sm:$0xff] %v1301
  %1338 = vst [vmem:[%s3 + $0x108] sm:$0xff] %v1302
  %1339 = vst [vmem:[%s3 + $0x110] sm:$0xff] %v1303
  %1340 = vst [vmem:[%s3 + $0x118] sm:$0xff] %v1304
  // Predicated region
  $region14: #{forward.3} parent=0 // pred_check
    _
  $region15: #{forward.3} parent=0 // pred_check_branch
    %1342 = sbr.rel (0) target = $region17
  $region16: #{forward.3} parent=0 // pred_region
    _
  $region17: #{forward.3} parent=0 // pred_fallthru
    _
  // Predicated region
  $region18: #{forward.3} parent=0 // pred_check
    _
  $region19: #{forward.3} parent=0 // pred_check_branch
    %1344 = sbr.rel (0) target = $region21
  $region20: #{forward.3} parent=0 // pred_region
    _
  $region21: #{forward.3} parent=0 // pred_fallthru
    _

// kernel: forward.4
$region0: #{forward.4}
  #allocation0 [shape = 'u32[]', space=smem, size = 0x4, offset = 0x4, fixed_abs, tag = 'smem constant byte address 0x4 - core index']
  #allocation1 [shape = 'u32[72,128]{1,0:T(1,128)}', space=vmem, size = 0x9000, scoped, tag = 'internal scratch']
  %s0 = inlined_call_operand.vmem [shape: bf16[4,32,256], index: 0, kind: input, shape index: {}]
  %s1 = inlined_call_operand.vmem [shape: bf16[256,128], index: 1, kind: input, shape index: {}]
  %s2 = inlined_call_operand.vmem [shape: f32[1,128], index: 2, kind: input, shape index: {}]
  %s3 = inlined_call_operand.vmem [shape: f32[32,128], index: 3, kind: output, shape index: {}]
  %s4 = sld [smem:[#allocation0]]
  $region22: #{forward.4} parent=0
    _
  %s6 = ssub.s32 1, %s4
  %s7 = scalar_select 0, %s6, %s4
  // Predicated region
  $region2: #{forward.4} parent=0 // pred_check
    _
  $region3: #{forward.4} parent=0 // pred_check_branch
    %9 = sbr.rel (0) target = $region5
  $region4: #{forward.4} parent=0 // pred_region
    _
  $region5: #{forward.4} parent=0 // pred_fallthru
    _
  // Predicated region
  $region6: #{forward.4} parent=0 // pred_check
    _
  $region7: #{forward.4} parent=0 // pred_check_branch
    %11 = sbr.rel (0) target = $region9
  $region8: #{forward.4} parent=0 // pred_region
    _
  $region9: #{forward.4} parent=0 // pred_fallthru
    _
  // Predicated region
  $region10: #{forward.4} parent=0 // pred_check
    _
  $region11: #{forward.4} parent=0 // pred_check_branch
    %13 = sbr.rel (0) target = $region13
  $region12: #{forward.4} parent=0 // pred_region
    _
  $region13: #{forward.4} parent=0 // pred_fallthru
    _
  %v14 = vld [vmem:[%s0] sm:$0xff]
  %v15 = vld [vmem:[%s0 + $0x8] sm:$0xff]
  %v16 = vld [vmem:[%s0 + $0x10] sm:$0xff]
  %v17 = vld [vmem:[%s0 + $0x18] sm:$0xff]
  %v18 = vld [vmem:[%s0 + $0x20] sm:$0xff]
  %v19 = vld [vmem:[%s0 + $0x28] sm:$0xff]
  %v20 = vld [vmem:[%s0 + $0x30] sm:$0xff]
  %v21 = vld [vmem:[%s0 + $0x38] sm:$0xff]
  %v22 = vld [vmem:[%s0 + $0x40] sm:$0xff]
  %v23 = vld [vmem:[%s0 + $0x48] sm:$0xff]
  %v24 = vld [vmem:[%s0 + $0x50] sm:$0xff]
  %v25 = vld [vmem:[%s0 + $0x58] sm:$0xff]
  %v26 = vld [vmem:[%s0 + $0x60] sm:$0xff]
  %v27 = vld [vmem:[%s0 + $0x68] sm:$0xff]
  %v28 = vld [vmem:[%s0 + $0x70] sm:$0xff]
  %v29 = vld [vmem:[%s0 + $0x78] sm:$0xff]
  %v30 = vld [vmem:[%s1] sm:$0xf]
  %v31 = vld [vmem:[%s1 + $0x4] sm:$0xf]
  %v32 = vld [vmem:[%s1 + $0x8] sm:$0xf]
  %v33 = vld [vmem:[%s1 + $0xc] sm:$0xf]
  %v34 = vld [vmem:[%s1 + $0x10] sm:$0xf]
  %v35 = vld [vmem:[%s1 + $0x14] sm:$0xf]
  %v36 = vld [vmem:[%s1 + $0x18] sm:$0xf]
  %v37 = vld [vmem:[%s1 + $0x1c] sm:$0xf]
  %v38 = vld [vmem:[%s1 + $0x20] sm:$0xf]
  %v39 = vld [vmem:[%s1 + $0x24] sm:$0xf]
  %v40 = vld [vmem:[%s1 + $0x28] sm:$0xf]
  %v41 = vld [vmem:[%s1 + $0x2c] sm:$0xf]
  %v42 = vld [vmem:[%s1 + $0x30] sm:$0xf]
  %v43 = vld [vmem:[%s1 + $0x34] sm:$0xf]
  %v44 = vld [vmem:[%s1 + $0x38] sm:$0xf]
  %v45 = vld [vmem:[%s1 + $0x3c] sm:$0xf]
  %v46 = vld [vmem:[%s1 + $0x40] sm:$0xf]
  %v47 = vld [vmem:[%s1 + $0x44] sm:$0xf]
  %v48 = vld [vmem:[%s1 + $0x48] sm:$0xf]
  %v49 = vld [vmem:[%s1 + $0x4c] sm:$0xf]
  %v50 = vld [vmem:[%s1 + $0x50] sm:$0xf]
  %v51 = vld [vmem:[%s1 + $0x54] sm:$0xf]
  %v52 = vld [vmem:[%s1 + $0x58] sm:$0xf]
  %v53 = vld [vmem:[%s1 + $0x5c] sm:$0xf]
  %v54 = vld [vmem:[%s1 + $0x60] sm:$0xf]
  %v55 = vld [vmem:[%s1 + $0x64] sm:$0xf]
  %v56 = vld [vmem:[%s1 + $0x68] sm:$0xf]
  %v57 = vld [vmem:[%s1 + $0x6c] sm:$0xf]
  %v58 = vld [vmem:[%s1 + $0x70] sm:$0xf]
  %v59 = vld [vmem:[%s1 + $0x74] sm:$0xf]
  %v60 = vld [vmem:[%s1 + $0x78] sm:$0xf]
  %v61 = vld [vmem:[%s1 + $0x7c] sm:$0xf]
  %v78 = vunpack.c.l.b16 %v14
  %v79 = vunpack.c.h.b16 %v14
  %v80 = vunpack.c.l.b16 %v15
  %v81 = vunpack.c.h.b16 %v15
  %v82 = vunpack.c.l.b16 %v16
  %v83 = vunpack.c.h.b16 %v16
  %v84 = vunpack.c.l.b16 %v17
  %v85 = vunpack.c.h.b16 %v17
  %v86 = vunpack.c.l.b16 %v18
  %v87 = vunpack.c.h.b16 %v18
  %v88 = vunpack.c.l.b16 %v19
  %v89 = vunpack.c.h.b16 %v19
  %v90 = vunpack.c.l.b16 %v20
  %v91 = vunpack.c.h.b16 %v20
  %v92 = vunpack.c.l.b16 %v21
  %v93 = vunpack.c.h.b16 %v21
  %v94 = vunpack.c.l.b16 %v22
  %v95 = vunpack.c.h.b16 %v22
  %v96 = vunpack.c.l.b16 %v23
  %v97 = vunpack.c.h.b16 %v23
  %v98 = vunpack.c.l.b16 %v24
  %v99 = vunpack.c.h.b16 %v24
  %v100 = vunpack.c.l.b16 %v25
  %v101 = vunpack.c.h.b16 %v25
  %v102 = vunpack.c.l.b16 %v26
  %v103 = vunpack.c.h.b16 %v26
  %v104 = vunpack.c.l.b16 %v27
  %v105 = vunpack.c.h.b16 %v27
  %v106 = vunpack.c.l.b16 %v28
  %v107 = vunpack.c.h.b16 %v28
  %v108 = vunpack.c.l.b16 %v29
  %v109 = vunpack.c.h.b16 %v29
  %v110 = vpack.c.b16 %v80, %v78
  %v111 = vpack.c.b16 %v81, %v79
  %v112 = vpack.c.b16 %v84, %v82
  %v113 = vpack.c.b16 %v85, %v83
  %v114 = vpack.c.b16 %v88, %v86
  %v115 = vpack.c.b16 %v89, %v87
  %v116 = vpack.c.b16 %v92, %v90
  %v117 = vpack.c.b16 %v93, %v91
  %v118 = vpack.c.b16 %v96, %v94
  %v119 = vpack.c.b16 %v97, %v95
  %v120 = vpack.c.b16 %v100, %v98
  %v121 = vpack.c.b16 %v101, %v99
  %v122 = vpack.c.b16 %v104, %v102
  %v123 = vpack.c.b16 %v105, %v103
  %v124 = vpack.c.b16 %v108, %v106
  %v125 = vpack.c.b16 %v109, %v107
  %v174 = vunpack.c.l.b16 %v30
  %v175 = vunpack.c.l.b16 %v31
  %v176 = vunpack.c.l.b16 %v32
  %v177 = vunpack.c.l.b16 %v33
  %v178 = vunpack.c.l.b16 %v34
  %v179 = vunpack.c.l.b16 %v35
  %v180 = vunpack.c.l.b16 %v36
  %v181 = vunpack.c.l.b16 %v37
  %v182 = vunpack.c.l.b16 %v38
  %v183 = vunpack.c.l.b16 %v39
  %v184 = vunpack.c.l.b16 %v40
  %v185 = vunpack.c.l.b16 %v41
  %v186 = vunpack.c.l.b16 %v42
  %v187 = vunpack.c.l.b16 %v43
  %v188 = vunpack.c.l.b16 %v44
  %v189 = vunpack.c.l.b16 %v45
  %v190 = vunpack.c.l.b16 %v46
  %v191 = vunpack.c.l.b16 %v47
  %v192 = vunpack.c.l.b16 %v48
  %v193 = vunpack.c.l.b16 %v49
  %v194 = vunpack.c.l.b16 %v50
  %v195 = vunpack.c.l.b16 %v51
  %v196 = vunpack.c.l.b16 %v52
  %v197 = vunpack.c.l.b16 %v53
  %v198 = vunpack.c.l.b16 %v54
  %v199 = vunpack.c.l.b16 %v55
  %v200 = vunpack.c.l.b16 %v56
  %v201 = vunpack.c.l.b16 %v57
  %v202 = vunpack.c.l.b16 %v58
  %v203 = vunpack.c.l.b16 %v59
  %v204 = vunpack.c.l.b16 %v60
  %v205 = vunpack.c.l.b16 %v61
  %v206 = vpack.c.b16 %v175, %v174
  %v207 = vpack.c.b16 %v177, %v176
  %v208 = vpack.c.b16 %v179, %v178
  %v209 = vpack.c.b16 %v181, %v180
  %v210 = vpack.c.b16 %v183, %v182
  %v211 = vpack.c.b16 %v185, %v184
  %v212 = vpack.c.b16 %v187, %v186
  %v213 = vpack.c.b16 %v189, %v188
  %v214 = vpack.c.b16 %v191, %v190
  %v215 = vpack.c.b16 %v193, %v192
  %v216 = vpack.c.b16 %v195, %v194
  %v217 = vpack.c.b16 %v197, %v196
  %v218 = vpack.c.b16 %v199, %v198
  %v219 = vpack.c.b16 %v201, %v200
  %v220 = vpack.c.b16 %v203, %v202
  %v221 = vpack.c.b16 %v205, %v204
  %238 = vmatpush.bf16.msra.mxu0 %v213
  %239 = vmatpush.bf16.msra.mxu0 %v212
  %240 = vmatpush.bf16.msra.mxu0 %v211
  %241 = vmatpush.bf16.msra.mxu0 %v210
  %242 = vmatpush.bf16.msra.mxu0 %v209
  %243 = vmatpush.bf16.msra.mxu0 %v208
  %244 = vmatpush.bf16.msra.mxu0 %v207
  %245 = vmatpush.bf16.msra.mxu0 %v206
  %246 = vmatmul.bf16.gmra.mxu0 %v110
  %v247 = vpop.f32.mrf.mxu0
  %v248 = vadd.f32 0.0, %v247
  %v249 = vpop.f32.mrf.mxu0
  %v250 = vadd.f32 0.0, %v249
  %251 = vmatmul.bf16.gmra.mxu0 %v112
  %v252 = vpop.f32.mrf.mxu0
  %v253 = vadd.f32 0.0, %v252
  %v254 = vpop.f32.mrf.mxu0
  %v255 = vadd.f32 0.0, %v254
  %256 = vmatmul.bf16.gmra.mxu0 %v114
  %v257 = vpop.f32.mrf.mxu0
  %v258 = vadd.f32 0.0, %v257
  %v259 = vpop.f32.mrf.mxu0
  %v260 = vadd.f32 0.0, %v259
  %261 = vmatmul.bf16.gmra.mxu0 %v116
  %v262 = vpop.f32.mrf.mxu0
  %v263 = vadd.f32 0.0, %v262
  %v264 = vpop.f32.mrf.mxu0
  %v265 = vadd.f32 0.0, %v264
  %266 = vmatmul.bf16.gmra.mxu0 %v118
  %v267 = vpop.f32.mrf.mxu0
  %v268 = vadd.f32 0.0, %v267
  %v269 = vpop.f32.mrf.mxu0
  %v270 = vadd.f32 0.0, %v269
  %271 = vmatmul.bf16.gmra.mxu0 %v120
  %v272 = vpop.f32.mrf.mxu0
  %v273 = vadd.f32 0.0, %v272
  %v274 = vpop.f32.mrf.mxu0
  %v275 = vadd.f32 0.0, %v274
  %276 = vmatmul.bf16.gmra.mxu0 %v122
  %v277 = vpop.f32.mrf.mxu0
  %v278 = vadd.f32 0.0, %v277
  %v279 = vpop.f32.mrf.mxu0
  %v280 = vadd.f32 0.0, %v279
  %281 = vmatmul.bf16.gmra.mxu0 %v124
  %v282 = vpop.f32.mrf.mxu0
  %v283 = vadd.f32 0.0, %v282
  %v284 = vpop.f32.mrf.mxu0
  %v285 = vadd.f32 0.0, %v284
  %286 = vdwg.mxu0
  %287 = vmatpush.bf16.msra.mxu0 %v221
  %288 = vmatpush.bf16.msra.mxu0 %v220
  %289 = vmatpush.bf16.msra.mxu0 %v219
  %290 = vmatpush.bf16.msra.mxu0 %v218
  %291 = vmatpush.bf16.msra.mxu0 %v217
  %292 = vmatpush.bf16.msra.mxu0 %v216
  %293 = vmatpush.bf16.msra.mxu0 %v215
  %294 = vmatpush.bf16.msra.mxu0 %v214
  %295 = vmatmul.bf16.gmra.mxu0 %v111
  %v296 = vpop.f32.mrf.mxu0
  %v297 = vadd.f32 %v248, %v296
  %v298 = vpop.f32.mrf.mxu0
  %v299 = vadd.f32 %v250, %v298
  %300 = vmatmul.bf16.gmra.mxu0 %v113
  %v301 = vpop.f32.mrf.mxu0
  %v302 = vadd.f32 %v253, %v301
  %v303 = vpop.f32.mrf.mxu0
  %v304 = vadd.f32 %v255, %v303
  %305 = vmatmul.bf16.gmra.mxu0 %v115
  %v306 = vpop.f32.mrf.mxu0
  %v307 = vadd.f32 %v258, %v306
  %v308 = vpop.f32.mrf.mxu0
  %v309 = vadd.f32 %v260, %v308
  %310 = vmatmul.bf16.gmra.mxu0 %v117
  %v311 = vpop.f32.mrf.mxu0
  %v312 = vadd.f32 %v263, %v311
  %v313 = vpop.f32.mrf.mxu0
  %v314 = vadd.f32 %v265, %v313
  %315 = vmatmul.bf16.gmra.mxu0 %v119
  %v316 = vpop.f32.mrf.mxu0
  %v317 = vadd.f32 %v268, %v316
  %v318 = vpop.f32.mrf.mxu0
  %v319 = vadd.f32 %v270, %v318
  %320 = vmatmul.bf16.gmra.mxu0 %v121
  %v321 = vpop.f32.mrf.mxu0
  %v322 = vadd.f32 %v273, %v321
  %v323 = vpop.f32.mrf.mxu0
  %v324 = vadd.f32 %v275, %v323
  %325 = vmatmul.bf16.gmra.mxu0 %v123
  %v326 = vpop.f32.mrf.mxu0
  %v327 = vadd.f32 %v278, %v326
  %v328 = vpop.f32.mrf.mxu0
  %v329 = vadd.f32 %v280, %v328
  %330 = vmatmul.bf16.gmra.mxu0 %v125
  %v331 = vpop.f32.mrf.mxu0
  %v332 = vadd.f32 %v283, %v331
  %v333 = vpop.f32.mrf.mxu0
  %v334 = vadd.f32 %v285, %v333
  %335 = vdwg.mxu0
  %v336 = vmax.f32 %v297, %v307
  %v337 = vmax.f32 %v299, %v309
  %v338 = vmax.f32 %v302, %v312
  %v339 = vmax.f32 %v304, %v314
  %v340 = vmax.f32 %v317, %v327
  %v341 = vmax.f32 %v319, %v329
  %v342 = vmax.f32 %v322, %v332
  %v343 = vmax.f32 %v324, %v334
  %v344 = vmax.f32 %v336, %v340
  %v345 = vmax.f32 %v337, %v341
  %v346 = vmax.f32 %v338, %v342
  %v347 = vmax.f32 %v339, %v343
  %v348 = vld [vmem:[%s2] sm:$0x1]
  %v350 = vperm.slane %v348, 0
  %v352 = vadd.f32 %v344, %v350
  %v353 = vadd.f32 %v345, %v350
  %v354 = vadd.f32 %v346, %v350
  %v355 = vadd.f32 %v347, %v350
  %v356 = vmax.f32 %v352, 0.0
  %v357 = vmax.f32 %v353, 0.0
  %v358 = vmax.f32 %v354, 0.0
  %v359 = vmax.f32 %v355, 0.0
  %360 = vst [vmem:[%s3] sm:$0xff] %v356
  %361 = vst [vmem:[%s3 + $0x8] sm:$0xff] %v357
  %362 = vst [vmem:[%s3 + $0x10] sm:$0xff] %v358
  %363 = vst [vmem:[%s3 + $0x18] sm:$0xff] %v359
  // Predicated region
  $region14: #{forward.4} parent=0 // pred_check
    _
  $region15: #{forward.4} parent=0 // pred_check_branch
    %365 = sbr.rel (0) target = $region17
  $region16: #{forward.4} parent=0 // pred_region
    _
  $region17: #{forward.4} parent=0 // pred_fallthru
    _
  // Predicated region
  $region18: #{forward.4} parent=0 // pred_check
    _
  $region19: #{forward.4} parent=0 // pred_check_branch
    %367 = sbr.rel (0) target = $region21
  $region20: #{forward.4} parent=0 // pred_region
    _
  $region21: #{forward.4} parent=0 // pred_fallthru
    _

// kernel: forward.5
$region0: #{forward.5}
  #allocation0 [shape = 'u32[]', space=smem, size = 0x4, offset = 0x4, fixed_abs, tag = 'smem constant byte address 0x4 - core index']
  #allocation1 [shape = 'u32[72,128]{1,0:T(1,128)}', space=vmem, size = 0x9000, scoped, tag = 'internal scratch']
  %s0 = inlined_call_operand.vmem [shape: bf16[2,320], index: 0, kind: input, shape index: {}]
  %s1 = inlined_call_operand.vmem [shape: bf16[320,128], index: 1, kind: input, shape index: {}]
  %s2 = inlined_call_operand.vmem [shape: f32[1,128], index: 2, kind: input, shape index: {}]
  %s3 = inlined_call_operand.hbm [shape: f32[2,128], index: 3, kind: output, shape index: {}]
  %s4 = sld [smem:[#allocation0]]
  $region22: #{forward.5} parent=0
    _
  %s6 = ssub.s32 1, %s4
  %s7 = scalar_select 0, %s6, %s4
  $region1: #{forward.5} parent=0
    #allocation2 [shape = 'u8[1024]{0}', space=vmem, size = 0x400, scoped, tag = 'output window, operand 0, single buffered']
    #allocation3 [shape = 's32[1]{0}', space=sflag, size = 0x4, scoped, tag = 'scoped memory for forward.5']
    %8 = vsyncpa [#allocation3], 0
    // Predicated region
    $region2: #{forward.5} parent=1 // pred_check
      _
    $region3: #{forward.5} parent=1 // pred_check_branch
      %10 = sbr.rel (0) target = $region5
    $region4: #{forward.5} parent=1 // pred_region
      _
    $region5: #{forward.5} parent=1 // pred_fallthru
      _
    // Predicated region
    $region6: #{forward.5} parent=1 // pred_check
      _
    $region7: #{forward.5} parent=1 // pred_check_branch
      %12 = sbr.rel (0) target = $region9
    $region8: #{forward.5} parent=1 // pred_region
      _
    $region9: #{forward.5} parent=1 // pred_fallthru
      _
    // Predicated region
    $region10: #{forward.5} parent=1 // pred_check
      _
    $region11: #{forward.5} parent=1 // pred_check_branch
      %14 = sbr.rel (0) target = $region13
    $region12: #{forward.5} parent=1 // pred_region
      _
    $region13: #{forward.5} parent=1 // pred_fallthru
      _
    %v16 = vld [vmem:[%s0] sm:$0x7]
    %v17 = vld [vmem:[%s1] sm:$0xf]
    %v18 = vld [vmem:[%s1 + $0x4] sm:$0xf]
    %v19 = vld [vmem:[%s1 + $0x8] sm:$0xf]
    %v20 = vld [vmem:[%s1 + $0xc] sm:$0xf]
    %v21 = vld [vmem:[%s1 + $0x10] sm:$0xf]
    %v22 = vld [vmem:[%s1 + $0x14] sm:$0xf]
    %v23 = vld [vmem:[%s1 + $0x18] sm:$0xf]
    %v24 = vld [vmem:[%s1 + $0x1c] sm:$0xf]
    %v25 = vld [vmem:[%s1 + $0x20] sm:$0xf]
    %v26 = vld [vmem:[%s1 + $0x24] sm:$0xf]
    %v27 = vld [vmem:[%s1 + $0x28] sm:$0xf]
    %v28 = vld [vmem:[%s1 + $0x2c] sm:$0xf]
    %v29 = vld [vmem:[%s1 + $0x30] sm:$0xf]
    %v30 = vld [vmem:[%s1 + $0x34] sm:$0xf]
    %v31 = vld [vmem:[%s1 + $0x38] sm:$0xf]
    %v32 = vld [vmem:[%s1 + $0x3c] sm:$0xf]
    %v33 = vld [vmem:[%s1 + $0x40] sm:$0xf]
    %v34 = vld [vmem:[%s1 + $0x44] sm:$0xf]
    %v35 = vld [vmem:[%s1 + $0x48] sm:$0xf]
    %v36 = vld [vmem:[%s1 + $0x4c] sm:$0xf]
    %v37 = vld [vmem:[%s1 + $0x50] sm:$0xf]
    %v38 = vld [vmem:[%s1 + $0x54] sm:$0xf]
    %v39 = vld [vmem:[%s1 + $0x58] sm:$0xf]
    %v40 = vld [vmem:[%s1 + $0x5c] sm:$0xf]
    %v41 = vld [vmem:[%s1 + $0x60] sm:$0xf]
    %v42 = vld [vmem:[%s1 + $0x64] sm:$0xf]
    %v43 = vld [vmem:[%s1 + $0x68] sm:$0xf]
    %v44 = vld [vmem:[%s1 + $0x6c] sm:$0xf]
    %v45 = vld [vmem:[%s1 + $0x70] sm:$0xf]
    %v46 = vld [vmem:[%s1 + $0x74] sm:$0xf]
    %v47 = vld [vmem:[%s1 + $0x78] sm:$0xf]
    %v48 = vld [vmem:[%s1 + $0x7c] sm:$0xf]
    %v49 = vld [vmem:[%s1 + $0x80] sm:$0xf]
    %v50 = vld [vmem:[%s1 + $0x84] sm:$0xf]
    %v51 = vld [vmem:[%s1 + $0x88] sm:$0xf]
    %v52 = vld [vmem:[%s1 + $0x8c] sm:$0xf]
    %v53 = vld [vmem:[%s1 + $0x90] sm:$0xf]
    %v54 = vld [vmem:[%s1 + $0x94] sm:$0xf]
    %v55 = vld [vmem:[%s1 + $0x98] sm:$0xf]
    %v56 = vld [vmem:[%s1 + $0x9c] sm:$0xf]
    %v57 = vld [vmem:[%s2] sm:$0x1]
    %v59 = vperm.slane %v57, 0
    %62 = vst [vmem:[#allocation1] ss:$9 sm:$0xff] %v16
    %v63 = vld [vmem:[#allocation1] sm:$0xff]
    %v64 = vld [vmem:[#allocation1 + $0x9] sm:$0xff]
    %v65 = vld [vmem:[#allocation1 + $0x12] sm:$0xff]
    %v108 = vunpack.c.l.b16 %v17
    %v109 = vunpack.c.l.b16 %v18
    %v110 = vunpack.c.l.b16 %v19
    %v111 = vunpack.c.l.b16 %v20
    %v112 = vunpack.c.l.b16 %v21
    %v113 = vunpack.c.l.b16 %v22
    %v114 = vunpack.c.l.b16 %v23
    %v115 = vunpack.c.l.b16 %v24
    %v116 = vunpack.c.l.b16 %v25
    %v117 = vunpack.c.l.b16 %v26
    %v118 = vunpack.c.l.b16 %v27
    %v119 = vunpack.c.l.b16 %v28
    %v120 = vunpack.c.l.b16 %v29
    %v121 = vunpack.c.l.b16 %v30
    %v122 = vunpack.c.l.b16 %v31
    %v123 = vunpack.c.l.b16 %v32
    %v124 = vunpack.c.l.b16 %v33
    %v125 = vunpack.c.l.b16 %v34
    %v126 = vunpack.c.l.b16 %v35
    %v127 = vunpack.c.l.b16 %v36
    %v128 = vunpack.c.l.b16 %v37
    %v129 = vunpack.c.l.b16 %v38
    %v130 = vunpack.c.l.b16 %v39
    %v131 = vunpack.c.l.b16 %v40
    %v132 = vunpack.c.l.b16 %v41
    %v133 = vunpack.c.l.b16 %v42
    %v134 = vunpack.c.l.b16 %v43
    %v135 = vunpack.c.l.b16 %v44
    %v136 = vunpack.c.l.b16 %v45
    %v137 = vunpack.c.l.b16 %v46
    %v138 = vunpack.c.l.b16 %v47
    %v139 = vunpack.c.l.b16 %v48
    %v140 = vunpack.c.l.b16 %v49
    %v141 = vunpack.c.l.b16 %v50
    %v142 = vunpack.c.l.b16 %v51
    %v143 = vunpack.c.l.b16 %v52
    %v144 = vunpack.c.l.b16 %v53
    %v145 = vunpack.c.l.b16 %v54
    %v146 = vunpack.c.l.b16 %v55
    %v147 = vunpack.c.l.b16 %v56
    %v148 = vpack.c.b16 %v109, %v108
    %v149 = vpack.c.b16 %v111, %v110
    %v150 = vpack.c.b16 %v113, %v112
    %v151 = vpack.c.b16 %v115, %v114
    %v152 = vpack.c.b16 %v117, %v116
    %v153 = vpack.c.b16 %v119, %v118
    %v154 = vpack.c.b16 %v121, %v120
    %v155 = vpack.c.b16 %v123, %v122
    %v156 = vpack.c.b16 %v125, %v124
    %v157 = vpack.c.b16 %v127, %v126
    %v158 = vpack.c.b16 %v129, %v128
    %v159 = vpack.c.b16 %v131, %v130
    %v160 = vpack.c.b16 %v133, %v132
    %v161 = vpack.c.b16 %v135, %v134
    %v162 = vpack.c.b16 %v137, %v136
    %v163 = vpack.c.b16 %v139, %v138
    %v164 = vpack.c.b16 %v141, %v140
    %v165 = vpack.c.b16 %v143, %v142
    %v166 = vpack.c.b16 %v145, %v144
    %v167 = vpack.c.b16 %v147, %v146
    %vm188 = vcmask 523264
    %v189 = vsel %vm188, %v65, 0
    %191 = vmatpush.bf16.msra.mxu0 %v155
    %192 = vmatpush.bf16.msra.mxu0 %v154
    %193 = vmatpush.bf16.msra.mxu0 %v153
    %194 = vmatpush.bf16.msra.mxu0 %v152
    %195 = vmatpush.bf16.msra.mxu0 %v151
    %196 = vmatpush.bf16.msra.mxu0 %v150
    %197 = vmatpush.bf16.msra.mxu0 %v149
    %198 = vmatpush.bf16.msra.mxu0 %v148
    %199 = vmatmul.bf16.gmra.mxu0 %v63
    %v200 = vpop.f32.mrf.mxu0
    %v201 = vadd.f32 %v59, %v200
    %v202 = vpop.f32.mrf.mxu0
    %203 = vdwg.mxu0
    %204 = vmatpush.bf16.msra.mxu0 %v163
    %205 = vmatpush.bf16.msra.mxu0 %v162
    %206 = vmatpush.bf16.msra.mxu0 %v161
    %207 = vmatpush.bf16.msra.mxu0 %v160
    %208 = vmatpush.bf16.msra.mxu0 %v159
    %209 = vmatpush.bf16.msra.mxu0 %v158
    %210 = vmatpush.bf16.msra.mxu0 %v157
    %211 = vmatpush.bf16.msra.mxu0 %v156
    %212 = vmatmul.bf16.gmra.mxu0 %v64
    %v213 = vpop.f32.mrf.mxu0
    %v214 = vadd.f32 %v201, %v213
    %v215 = vpop.f32.mrf.mxu0
    %216 = vdwg.mxu0
    %217 = vmatpush.bf16.msra.mxu0 0
    %218 = vmatpush.bf16.msra.mxu0 0
    %219 = vmatpush.bf16.msra.mxu0 0
    %220 = vmatpush.bf16.msra.mxu0 0
    %221 = vmatpush.bf16.msra.mxu0 %v167
    %222 = vmatpush.bf16.msra.mxu0 %v166
    %223 = vmatpush.bf16.msra.mxu0 %v165
    %224 = vmatpush.bf16.msra.mxu0 %v164
    %225 = vmatmul.bf16.gmra.mxu0 %v189
    %v226 = vpop.f32.mrf.mxu0
    %v227 = vadd.f32 %v214, %v226
    %v228 = vpop.f32.mrf.mxu0
    %229 = vdwg.mxu0
    %230 = vst [vmem:[#allocation2] sm:$0x3] %v227
    // Predicated region
    $region14: #{forward.5} parent=1 // pred_check
      _
    $region15: #{forward.5} parent=1 // pred_check_branch
      %232 = sbr.rel (0) target = $region17
    $region16: #{forward.5} parent=1 // pred_region
      %234 = vsyncadd [#allocation3], 0
      %s236 = sshll.u32 [#allocation2], 4
      %s237 = int_to_ptr.vmem [resolvable:$true] %s236
      %s238 = sshll.u32 %s3, 4
      %s239 = int_to_ptr.hbm [resolvable:$true] %s238
      %241 = dma.vmem_to_hbm [thread:$0]  %s237, 32, %s239, [#allocation3]
    $region17: #{forward.5} parent=1 // pred_fallthru
      _
    // Predicated region
    $region18: #{forward.5} parent=1 // pred_check
      _
    $region19: #{forward.5} parent=1 // pred_check_branch
      %243 = sbr.rel (0) target = $region21
    $region20: #{forward.5} parent=1 // pred_region
      %245 = dma.done [#allocation3], 32
    $region21: #{forward.5} parent=1 // pred_fallthru
      _
    %246 = vsyncpa [#allocation3], 1

</llo_original>
